<compile_context>
chip_gen: v7x
topology: tpu7x:2x2x1
jax: 0.10.0
libtpu: 0.0.40
codegen_flags: <defaults>
</compile_context>

<pallas_src>
import jax
import jax.numpy as jnp
from jax.experimental import pallas as pl
from jax.experimental.pallas import tpu as pltpu

DELTA = 1e-3  # small constant used by segment_resolver (not defined in snippet)


# ----------------------------------------------------------------------------
# Fused kernel: block-diag RNN + dual additive attention + mixer + refiner
# ----------------------------------------------------------------------------
def make_localizer_kernel(B, Lmax, H):
    f32 = jnp.float32
    bf16 = jnp.bfloat16
    H2, H3 = 2 * H, 3 * H

    def kernel(x_ref,        # (Lmax*B, E+Dv) bf16  time-major flattened [sent | video]
               mask_ref,     # (Lmax*B, 2)    f32   col0 = sent mask, col1 = video mask
               len_ref,      # (B, 2H)        i32   lanes 0:H = sent_len, H:2H = vid_len
               vtime_ref,    # (B, 1)         f32   video_time_len
               wih_ref,      # (E+Dv, 2H)     bf16  block-diag input weights
               wsq_ref,      # (8H, 2H)       bf16  [Whh_blk; Wenc_blk; Whid_blk; fc_W pad]
               wcomb_ref,    # (9H, 128)      bf16  [c1_W pad; c2_W pad; refiner_W pad]
               row_ref,      # (8, 128)       f32   packed bias / scale / shift / v rows
               out_ref,      # (B, 128)       f32   lane-dense output slab
               enc_ref):     # (Lmax*B, 2H)   f32   VMEM scratch: hidden states
        # ---- hoisted input projection: one MXU dot for the whole sequence ---
        b_ih = row_ref[0:1, 0:H2]                                    # (1, 2H)
        xproj = jnp.dot(x_ref[...], wih_ref[...],
                        preferred_element_type=f32) + b_ih           # (Lmax*B, 2H)

        # ---- fused block-diagonal recurrence (text || video) ----------------
        whh = wsq_ref[0:H2, :]                                       # (2H, 2H) bf16
        len_cat = len_ref[...]                                       # (B, 2H) i32
        h = jnp.zeros((B, H2), f32)
        last = jnp.zeros((B, H2), f32)
        for t in range(Lmax):                 # static unroll; only h@Whh is serial
            pre = xproj[t * B:(t + 1) * B, :] + jnp.dot(
                h.astype(bf16), whh, preferred_element_type=f32)
            h = jnp.tanh(pre)
            enc_ref[t * B:(t + 1) * B, :] = h                        # free vregs each step
            last = jnp.where(len_cat == (t + 1), h, last)            # last hidden select

        enc = enc_ref[...]                                           # (Lmax*B, 2H) f32

        # ---- additive attention: enc-projection hoisted to one dot ----------
        encw = jnp.dot(enc.astype(bf16), wsq_ref[H2:2 * H2, :],
                       preferred_element_type=f32)                   # (Lmax*B, 2H)
        # text attention queries with video last hidden and vice versa
        hid_swap = jnp.concatenate([last[:, H:], last[:, :H]], axis=-1)   # (B, 2H)
        hidw = jnp.dot(hid_swap.astype(bf16), wsq_ref[2 * H2:3 * H2, :],
                       preferred_element_type=f32)                   # (B, 2H)
        hidw_t = jnp.concatenate([hidw] * Lmax, axis=0)              # (Lmax*B, 2H)

        v_row = row_ref[1:2, 0:H2]                                   # [t_v | v_v]
        prod = jnp.tanh(encw + hidw_t) * v_row                       # (Lmax*B, 2H)
        s_txt = jnp.sum(prod[:, :H], axis=1, keepdims=True)          # (Lmax*B, 1)
        s_vid = jnp.sum(prod[:, H:], axis=1, keepdims=True)
        s = jnp.concatenate([s_txt, s_vid], axis=-1)                 # (Lmax*B, 2)
        s = jnp.where(mask_ref[...] > 0.0, s, jnp.full_like(s, -1e30))

        # masked softmax over time + VPU weighted context (tiny unrolled loops)
        m = jnp.full((B, 2), -1e30, f32)
        for t in range(Lmax):
            m = jnp.maximum(m, s[t * B:(t + 1) * B, :])
        lane = jax.lax.broadcasted_iota(jnp.int32, (B, H2), 1)
        l = jnp.zeros((B, 2), f32)
        acc = jnp.zeros((B, H2), f32)
        for t in range(Lmax):
            w_t = jnp.exp(s[t * B:(t + 1) * B, :] - m)               # (B, 2)
            l = l + w_t
            w_full = jnp.where(lane < H, w_t[:, 0:1], w_t[:, 1:2])   # (B, 2H)
            acc = acc + w_full * enc[t * B:(t + 1) * B, :]
        inv = pl.reciprocal(l, approx=True)
        inv_full = jnp.where(lane < H, inv[:, 0:1], inv[:, 1:2])
        ctx = acc * inv_full                          # lanes 0:H text_ctx, H:2H video_ctx

        # eval-mode BatchNorm folded to scale/shift (wrapper-side fold)
        ctx = ctx * row_ref[2:3, 0:H2] + row_ref[3:4, 0:H2]

        # ---- FeatureMixerType0 head: fused K=64 / K=96 dots ------------------
        fc_w = wsq_ref[3 * H2:4 * H2, 0:H]                           # (2H, H) bf16
        h1 = jnp.dot(ctx.astype(bf16), fc_w,
                     preferred_element_type=f32) + row_ref[4:5, 0:H]
        t_ctx = ctx[:, :H]
        v_ctx = ctx[:, H:]
        y = jnp.concatenate([h1, t_ctx * v_ctx, t_ctx + v_ctx], axis=-1)   # (B, 3H)

        y = jnp.dot(y.astype(bf16), wcomb_ref[0:H3, 0:H3],
                    preferred_element_type=f32) + row_ref[5:6, 0:H3]
        y = jnp.maximum(y, 0.0)
        # Dropout(p=fc_dropout) -> identity in eval mode
        y = jnp.dot(y.astype(bf16), wcomb_ref[H3:2 * H3, 0:H3],
                    preferred_element_type=f32) + row_ref[6:7, 0:H3]
        y = jnp.maximum(y, 0.0)                                      # (B, 3H)

        # refiner (zero-padded to 128 lanes -> dense output tile) + sigmoid
        logits = jnp.dot(y.astype(bf16), wcomb_ref[2 * H3:3 * H3, :],
                         preferred_element_type=f32) + row_ref[7:8, :]
        refined = jax.nn.sigmoid(logits)                             # (B, 128)

        # segment_resolver on lanes 0 (=c) and 1 (=w)
        c = refined[:, 0:1]
        w = refined[:, 1:2]
        vt = vtime_ref[...]
        s_time = jnp.maximum(c - 0.5 * w, 0.0) * vt
        e_time = jnp.minimum(c + 0.5 * w, 1.0 - DELTA) * vt

        out_lane = jax.lax.broadcasted_iota(jnp.int32, refined.shape, 1)
        out_ref[...] = jnp.where(out_lane == 2, s_time,
                                 jnp.where(out_lane == 3, e_time, refined))

    return kernel


def run_localizer_kernel(inputs, B, Lmax, H):
    vmem = pl.BlockSpec(memory_space=pltpu.MemorySpace.VMEM)
    return pl.pallas_call(
        make_localizer_kernel(B, Lmax, H),
        out_shape=jax.ShapeDtypeStruct((B, 128), jnp.float32),
        in_specs=[vmem] * len(inputs),
        out_specs=vmem,
        scratch_shapes=[pltpu.VMEM((Lmax * B, 2 * H), jnp.float32)],
    )(*inputs)


# ----------------------------------------------------------------------------
# Wrapper: embedding lookup, gathers, padding & flattening in JAX, one call
# ----------------------------------------------------------------------------
def sentence_localizer_forward(p, video_feat, video_length, video_mask,
                               sent, sent_length, sent_mask, sent_gather_idx):
    f32, bf16 = jnp.float32, jnp.bfloat16
    H = p["W_sq"].shape[1] // 2
    Bs, Ls = sent.shape
    Lv = video_feat.shape[1]
    Lmax = max(Ls, Lv)

    # embedding lookup + data-dependent gathers stay in plain JAX
    sent_emb = p["embedding"][sent].astype(f32)                   # (Bs, Ls, E)
    vfeat_g = video_feat[sent_gather_idx].astype(f32)             # (Bs, Lv, Dv)
    vlen_g = video_length[sent_gather_idx]                        # (Bs, 2)
    vmask_g = video_mask[sent_gather_idx][:, :, 0].astype(f32)    # (Bs, Lv)
    vid_seq_len = vlen_g[:, 0:1].astype(jnp.int32)                # (Bs, 1)
    vtime = vlen_g[:, 1:2].astype(f32)                            # (Bs, 1)
    slen = sent_length.astype(jnp.int32)[:, None]                 # (Bs, 1)

    def pad_time(x, L):
        pad = [(0, 0), (0, Lmax - L)] + [(0, 0)] * (x.ndim - 2)
        return jnp.pad(x, pad)

    sent_emb_p = pad_time(sent_emb, Ls)                           # (Bs, Lmax, E)
    vfeat_p = pad_time(vfeat_g, Lv)                               # (Bs, Lmax, Dv)
    smask_p = pad_time(sent_mask.astype(f32), Ls)                 # (Bs, Lmax)
    vmask_p = pad_time(vmask_g, Lv)                               # (Bs, Lmax)

    # time-major flattened input (row = t*Bs + b), features lane-concatenated
    x_cat = jnp.concatenate([sent_emb_p, vfeat_p], axis=-1)       # (Bs, Lmax, E+Dv)
    x_seq = jnp.swapaxes(x_cat, 0, 1).reshape(Lmax * Bs, -1).astype(bf16)
    mask_flat = jnp.stack([smask_p, vmask_p], axis=-1)            # (Bs, Lmax, 2)
    mask_flat = jnp.swapaxes(mask_flat, 0, 1).reshape(Lmax * Bs, 2)
    len_cat = jnp.concatenate([jnp.broadcast_to(slen, (Bs, H)),
                               jnp.broadcast_to(vid_seq_len, (Bs, H))],
                              axis=-1)                            # (Bs, 2H) i32

    inputs = (x_seq, mask_flat, len_cat, vtime,
              p["Wih_blk"], p["W_sq"], p["W_comb"], p["rowvec"])
    out = run_localizer_kernel(inputs, Bs, Lmax, H)               # (Bs, 128)
    refining = out[:, 0:2]
    final_prediction_time = out[:, 2:4]
    return None, refining, final_prediction_time


# ----------------------------------------------------------------------------
# Parameters: raw (PyTorch-like) + one-time inference folding / packing
# ----------------------------------------------------------------------------
def make_params(key, hidden_dim, vocab, emb_dim, video_dim):
    H = hidden_dim
    ks = jax.random.split(key, 24)

    def nrm(k, shape, s=0.1):
        return (s * jax.random.normal(k, shape)).astype(jnp.float32)

    def bn_params(k, dim):
        k1, k2, k3, k4 = jax.random.split(k, 4)
        gamma = 1.0 + 0.1 * jax.random.normal(k1, (dim,))
        beta = 0.1 * jax.random.normal(k2, (dim,))
        mean = 0.1 * jax.random.normal(k3, (dim,))
        var = 1.0 + 0.1 * jax.random.uniform(k4, (dim,))
        return jnp.stack([gamma, beta, mean, var]).astype(jnp.float32)

    return dict(
        embedding=nrm(ks[0], (vocab, emb_dim)),
        txt_W_ih=nrm(ks[1], (emb_dim, H)), txt_W_hh=nrm(ks[2], (H, H)),
        txt_b=nrm(ks[3], (H,)),
        vid_W_ih=nrm(ks[4], (video_dim, H)), vid_W_hh=nrm(ks[5], (H, H)),
        vid_b=nrm(ks[6], (H,)),
        t_Wenc=nrm(ks[7], (H, H)), t_Whid=nrm(ks[8], (H, H)), t_v=nrm(ks[9], (1, H)),
        v_Wenc=nrm(ks[10], (H, H)), v_Whid=nrm(ks[11], (H, H)), v_v=nrm(ks[12], (1, H)),
        t_bn=bn_params(ks[13], H), v_bn=bn_params(ks[14], H),
        fc_W=nrm(ks[15], (2 * H, H)), fc_b=nrm(ks[16], (1, H)),
        c_W1=nrm(ks[17], (3 * H, 3 * H)), c_bn1=bn_params(ks[18], 3 * H),
        c_W2=nrm(ks[19], (3 * H, 3 * H)), c_bn2=bn_params(ks[20], 3 * H),
        r_W=nrm(ks[21], (3 * H, 2)), r_b=nrm(ks[22], (1, 2)),
    )


def prepare_inference_params(raw, eps=1e-5):
    """One-time folding: BN -> scale/shift, block-diag packing, bf16 weights."""
    f32, bf16 = jnp.float32, jnp.bfloat16
    H = raw["fc_W"].shape[1]
    H2, H3 = 2 * H, 3 * H
    assert H3 <= 128, "packing assumes 3*hidden_dim <= 128 lanes"

    def bn_fold(bn):
        gamma, beta, mean, var = bn[0], bn[1], bn[2], bn[3]
        scale = gamma * jax.lax.rsqrt(var + eps)
        shift = beta - mean * scale
        return scale.astype(f32), shift.astype(f32)

    t_scale, t_shift = bn_fold(raw["t_bn"])
    v_scale, v_shift = bn_fold(raw["v_bn"])
    c1_scale, c1_shift = bn_fold(raw["c_bn1"])
    c2_scale, c2_shift = bn_fold(raw["c_bn2"])

    def blockdiag(a, b):
        ra, ca = a.shape
        rb, cb = b.shape
        out = jnp.zeros((ra + rb, ca + cb), f32)
        return out.at[:ra, :ca].set(a).at[ra:, ca:].set(b)

    Wih_blk = blockdiag(raw["txt_W_ih"], raw["vid_W_ih"]).astype(bf16)   # (E+Dv, 2H)
    Whh_blk = blockdiag(raw["txt_W_hh"], raw["vid_W_hh"])
    Wenc_blk = blockdiag(raw["t_Wenc"], raw["v_Wenc"])
    Whid_blk = blockdiag(raw["t_Whid"], raw["v_Whid"])
    fc_pad = jnp.zeros((H2, H2), f32).at[:, :H].set(raw["fc_W"])
    W_sq = jnp.concatenate([Whh_blk, Wenc_blk, Whid_blk, fc_pad],
                           axis=0).astype(bf16)                          # (8H, 2H)

    c1f = raw["c_W1"] * c1_scale[None, :]     # fold BN scale into columns
    c2f = raw["c_W2"] * c2_scale[None, :]

    def pad128(w):
        return jnp.zeros((w.shape[0], 128), f32).at[:, :w.shape[1]].set(w)

    W_comb = jnp.concatenate([pad128(c1f), pad128(c2f), pad128(raw["r_W"])],
                             axis=0).astype(bf16)                        # (9H, 128)

    def row(vec):
        return jnp.zeros((128,), f32).at[:vec.shape[0]].set(vec)

    rowvec = jnp.stack([
        row(jnp.concatenate([raw["txt_b"], raw["vid_b"]])),      # 0: RNN input bias (2H)
        row(jnp.concatenate([raw["t_v"][0], raw["v_v"][0]])),    # 1: attention v (2H)
        row(jnp.concatenate([t_scale, v_scale])),                # 2: ctx BN scale (2H)
        row(jnp.concatenate([t_shift, v_shift])),                # 3: ctx BN shift (2H)
        row(raw["fc_b"][0]),                                     # 4: fc bias (H)
        row(c1_shift),                                           # 5: combiner1 shift (3H)
        row(c2_shift),                                           # 6: combiner2 shift (3H)
        row(raw["r_b"][0]),                                      # 7: refiner bias
    ], axis=0)                                                   # (8, 128) f32

    return dict(embedding=raw["embedding"], Wih_blk=Wih_blk, W_sq=W_sq,
                W_comb=W_comb, rowvec=rowvec)


if __name__ == "__main__":
    H = 32               # hidden_dim
    VOCAB = 50           # sent_vocab_size
    EMB = 32             # sent_embedding_dim
    VID_DIM = 16         # video_feature_dim
    B_VIDEO, L_VIDEO = 2, 12
    B_SENT, L_SENT = 4, 8

    key = jax.random.PRNGKey(0)
    k_p, k_vf, k_s = jax.random.split(key, 3)
    raw_params = make_params(k_p, H, VOCAB, EMB, VID_DIM)
    params = prepare_inference_params(raw_params)

    video_feat = jax.random.normal(k_vf, (B_VIDEO, L_VIDEO, VID_DIM), jnp.float32)
    video_seq_len = jnp.array([12, 10], jnp.int32)
    video_time = jnp.array([30.0, 24.0], jnp.float32)
    video_length = jnp.stack([video_seq_len.astype(jnp.float32), video_time], axis=1)
    video_mask = (jnp.arange(L_VIDEO)[None, :] < video_seq_len[:, None]
                  ).astype(jnp.float32)[:, :, None]                    # (Bv, Lv, 1)

    sent = jax.random.randint(k_s, (B_SENT, L_SENT), 0, VOCAB, jnp.int32)
    sent_length = jnp.array([8, 6, 7, 5], jnp.int32)
    sent_mask = (jnp.arange(L_SENT)[None, :] < sent_length[:, None]).astype(jnp.float32)
    sent_gather_idx = jnp.array([0, 0, 1, 1], jnp.int32)

    fwd = jax.jit(sentence_localizer_forward)
    _, refining, pred_time = fwd(
        params, video_feat, video_length, video_mask,
        sent, sent_length, sent_mask, sent_gather_idx)

    jax.block_until_ready((refining, pred_time))
    assert refining.shape == (B_SENT, 2) and pred_time.shape == (B_SENT, 2)
    print("KERNEL_OK")
</pallas_src>

<mosaic_0001>
module attributes {stable_mosaic.version = 11 : i64} {
  func.func @kernel(%arg0: memref<48x48xbf16, #tpu.memory_space<vmem>>, %arg1: memref<48x2xf32, #tpu.memory_space<vmem>>, %arg2: memref<4x64xi32, #tpu.memory_space<vmem>>, %arg3: memref<4x1xf32, #tpu.memory_space<vmem>>, %arg4: memref<48x64xbf16, #tpu.memory_space<vmem>>, %arg5: memref<256x64xbf16, #tpu.memory_space<vmem>>, %arg6: memref<288x128xbf16, #tpu.memory_space<vmem>>, %arg7: memref<8x128xf32, #tpu.memory_space<vmem>>, %arg8: memref<4x128xf32, #tpu.memory_space<vmem>>, %arg9: memref<48x64xf32, #tpu.memory_space<vmem>>) attributes {dimension_semantics = [], scalar_prefetch = 0 : i64, scratch_operands = 1 : i64, tpu.core_type = #tpu.core_type<tc>} {
    %c0 = arith.constant 0 : index
    %c0_0 = arith.constant 0 : index
    %0 = vector.load %arg7[%c0, %c0_0] : memref<8x128xf32, #tpu.memory_space<vmem>>, vector<1x64xf32>
    %c0_1 = arith.constant 0 : index
    %c0_2 = arith.constant 0 : index
    %1 = vector.load %arg0[%c0_1, %c0_2] : memref<48x48xbf16, #tpu.memory_space<vmem>>, vector<48x48xbf16>
    %c0_3 = arith.constant 0 : index
    %c0_4 = arith.constant 0 : index
    %2 = vector.load %arg4[%c0_3, %c0_4] : memref<48x64xbf16, #tpu.memory_space<vmem>>, vector<48x64xbf16>
    %cst = arith.constant dense<0.000000e+00> : vector<48x64xf32>
    %3 = tpu.matmul %1, %2, %cst {dimension_numbers = #tpu.dot_dimension_numbers<[1], [0], [0], [1], [0, 0, 1, 1], [], []>} : vector<48x48xbf16>, vector<48x64xbf16>, vector<48x64xf32> -> vector<48x64xf32>
    %4 = vector.broadcast %0 : vector<1x64xf32> to vector<48x64xf32>
    %5 = arith.addf %3, %4 : vector<48x64xf32>
    %c0_5 = arith.constant 0 : index
    %c0_6 = arith.constant 0 : index
    %6 = vector.load %arg5[%c0_5, %c0_6] : memref<256x64xbf16, #tpu.memory_space<vmem>>, vector<64x64xbf16>
    %c0_7 = arith.constant 0 : index
    %c0_8 = arith.constant 0 : index
    %7 = vector.load %arg2[%c0_7, %c0_8] : memref<4x64xi32, #tpu.memory_space<vmem>>, vector<4x64xi32>
    %cst_9 = arith.constant 0.000000e+00 : f32
    %8 = vector.broadcast %cst_9 : f32 to vector<4x64xf32>
    %cst_10 = arith.constant 0.000000e+00 : f32
    %9 = vector.broadcast %cst_10 : f32 to vector<4x64xf32>
    %10 = vector.extract_strided_slice %5 {offsets = [0, 0], sizes = [4, 64], strides = [1, 1]} : vector<48x64xf32> to vector<4x64xf32>
    %11 = arith.truncf %8 : vector<4x64xf32> to vector<4x64xbf16>
    %cst_11 = arith.constant dense<0.000000e+00> : vector<4x64xf32>
    %12 = tpu.matmul %11, %6, %cst_11 {dimension_numbers = #tpu.dot_dimension_numbers<[1], [0], [0], [1], [0, 0, 1, 1], [], []>} : vector<4x64xbf16>, vector<64x64xbf16>, vector<4x64xf32> -> vector<4x64xf32>
    %13 = arith.addf %10, %12 : vector<4x64xf32>
    %14 = math.tanh %13 : vector<4x64xf32>
    %c0_12 = arith.constant 0 : index
    %c0_13 = arith.constant 0 : index
    %15 = vector.load %arg9[%c0_12, %c0_13] : memref<48x64xf32, #tpu.memory_space<vmem>>, vector<4x64xf32>
    tpu.vector_store %arg9[%c0_12, %c0_13], %14 {strides = array<i32>} : memref<48x64xf32, #tpu.memory_space<vmem>>, vector<4x64xf32>,
    %c1_i32 = arith.constant 1 : i32
    %16 = vector.broadcast %c1_i32 : i32 to vector<4x64xi32>
    %17 = arith.cmpi eq, %7, %16 : vector<4x64xi32>
    %18 = arith.select %17, %14, %9 : vector<4x64xi1>, vector<4x64xf32>
    %19 = vector.extract_strided_slice %5 {offsets = [4, 0], sizes = [4, 64], strides = [1, 1]} : vector<48x64xf32> to vector<4x64xf32>
    %20 = arith.truncf %14 : vector<4x64xf32> to vector<4x64xbf16>
    %cst_14 = arith.constant dense<0.000000e+00> : vector<4x64xf32>
    %21 = tpu.matmul %20, %6, %cst_14 {dimension_numbers = #tpu.dot_dimension_numbers<[1], [0], [0], [1], [0, 0, 1, 1], [], []>} : vector<4x64xbf16>, vector<64x64xbf16>, vector<4x64xf32> -> vector<4x64xf32>
    %22 = arith.addf %19, %21 : vector<4x64xf32>
    %23 = math.tanh %22 : vector<4x64xf32>
    %c4 = arith.constant 4 : index
    %c0_15 = arith.constant 0 : index
    %24 = vector.load %arg9[%c4, %c0_15] : memref<48x64xf32, #tpu.memory_space<vmem>>, vector<4x64xf32>
    tpu.vector_store %arg9[%c4, %c0_15], %23 {strides = array<i32>} : memref<48x64xf32, #tpu.memory_space<vmem>>, vector<4x64xf32>,
    %c2_i32 = arith.constant 2 : i32
    %25 = vector.broadcast %c2_i32 : i32 to vector<4x64xi32>
    %26 = arith.cmpi eq, %7, %25 : vector<4x64xi32>
    %27 = arith.select %26, %23, %18 : vector<4x64xi1>, vector<4x64xf32>
    %28 = vector.extract_strided_slice %5 {offsets = [8, 0], sizes = [4, 64], strides = [1, 1]} : vector<48x64xf32> to vector<4x64xf32>
    %29 = arith.truncf %23 : vector<4x64xf32> to vector<4x64xbf16>
    %cst_16 = arith.constant dense<0.000000e+00> : vector<4x64xf32>
    %30 = tpu.matmul %29, %6, %cst_16 {dimension_numbers = #tpu.dot_dimension_numbers<[1], [0], [0], [1], [0, 0, 1, 1], [], []>} : vector<4x64xbf16>, vector<64x64xbf16>, vector<4x64xf32> -> vector<4x64xf32>
    %31 = arith.addf %28, %30 : vector<4x64xf32>
    %32 = math.tanh %31 : vector<4x64xf32>
    %c8 = arith.constant 8 : index
    %c0_17 = arith.constant 0 : index
    %33 = vector.load %arg9[%c8, %c0_17] : memref<48x64xf32, #tpu.memory_space<vmem>>, vector<4x64xf32>
    tpu.vector_store %arg9[%c8, %c0_17], %32 {strides = array<i32>} : memref<48x64xf32, #tpu.memory_space<vmem>>, vector<4x64xf32>,
    %c3_i32 = arith.constant 3 : i32
    %34 = vector.broadcast %c3_i32 : i32 to vector<4x64xi32>
    %35 = arith.cmpi eq, %7, %34 : vector<4x64xi32>
    %36 = arith.select %35, %32, %27 : vector<4x64xi1>, vector<4x64xf32>
    %37 = vector.extract_strided_slice %5 {offsets = [12, 0], sizes = [4, 64], strides = [1, 1]} : vector<48x64xf32> to vector<4x64xf32>
    %38 = arith.truncf %32 : vector<4x64xf32> to vector<4x64xbf16>
    %cst_18 = arith.constant dense<0.000000e+00> : vector<4x64xf32>
    %39 = tpu.matmul %38, %6, %cst_18 {dimension_numbers = #tpu.dot_dimension_numbers<[1], [0], [0], [1], [0, 0, 1, 1], [], []>} : vector<4x64xbf16>, vector<64x64xbf16>, vector<4x64xf32> -> vector<4x64xf32>
    %40 = arith.addf %37, %39 : vector<4x64xf32>
    %41 = math.tanh %40 : vector<4x64xf32>
    %c12 = arith.constant 12 : index
    %c0_19 = arith.constant 0 : index
    %42 = vector.load %arg9[%c12, %c0_19] : memref<48x64xf32, #tpu.memory_space<vmem>>, vector<4x64xf32>
    tpu.vector_store %arg9[%c12, %c0_19], %41 {strides = array<i32>} : memref<48x64xf32, #tpu.memory_space<vmem>>, vector<4x64xf32>,
    %c4_i32 = arith.constant 4 : i32
    %43 = vector.broadcast %c4_i32 : i32 to vector<4x64xi32>
    %44 = arith.cmpi eq, %7, %43 : vector<4x64xi32>
    %45 = arith.select %44, %41, %36 : vector<4x64xi1>, vector<4x64xf32>
    %46 = vector.extract_strided_slice %5 {offsets = [16, 0], sizes = [4, 64], strides = [1, 1]} : vector<48x64xf32> to vector<4x64xf32>
    %47 = arith.truncf %41 : vector<4x64xf32> to vector<4x64xbf16>
    %cst_20 = arith.constant dense<0.000000e+00> : vector<4x64xf32>
    %48 = tpu.matmul %47, %6, %cst_20 {dimension_numbers = #tpu.dot_dimension_numbers<[1], [0], [0], [1], [0, 0, 1, 1], [], []>} : vector<4x64xbf16>, vector<64x64xbf16>, vector<4x64xf32> -> vector<4x64xf32>
    %49 = arith.addf %46, %48 : vector<4x64xf32>
    %50 = math.tanh %49 : vector<4x64xf32>
    %c16 = arith.constant 16 : index
    %c0_21 = arith.constant 0 : index
    %51 = vector.load %arg9[%c16, %c0_21] : memref<48x64xf32, #tpu.memory_space<vmem>>, vector<4x64xf32>
    tpu.vector_store %arg9[%c16, %c0_21], %50 {strides = array<i32>} : memref<48x64xf32, #tpu.memory_space<vmem>>, vector<4x64xf32>,
    %c5_i32 = arith.constant 5 : i32
    %52 = vector.broadcast %c5_i32 : i32 to vector<4x64xi32>
    %53 = arith.cmpi eq, %7, %52 : vector<4x64xi32>
    %54 = arith.select %53, %50, %45 : vector<4x64xi1>, vector<4x64xf32>
    %55 = vector.extract_strided_slice %5 {offsets = [20, 0], sizes = [4, 64], strides = [1, 1]} : vector<48x64xf32> to vector<4x64xf32>
    %56 = arith.truncf %50 : vector<4x64xf32> to vector<4x64xbf16>
    %cst_22 = arith.constant dense<0.000000e+00> : vector<4x64xf32>
    %57 = tpu.matmul %56, %6, %cst_22 {dimension_numbers = #tpu.dot_dimension_numbers<[1], [0], [0], [1], [0, 0, 1, 1], [], []>} : vector<4x64xbf16>, vector<64x64xbf16>, vector<4x64xf32> -> vector<4x64xf32>
    %58 = arith.addf %55, %57 : vector<4x64xf32>
    %59 = math.tanh %58 : vector<4x64xf32>
    %c20 = arith.constant 20 : index
    %c0_23 = arith.constant 0 : index
    %60 = vector.load %arg9[%c20, %c0_23] : memref<48x64xf32, #tpu.memory_space<vmem>>, vector<4x64xf32>
    tpu.vector_store %arg9[%c20, %c0_23], %59 {strides = array<i32>} : memref<48x64xf32, #tpu.memory_space<vmem>>, vector<4x64xf32>,
    %c6_i32 = arith.constant 6 : i32
    %61 = vector.broadcast %c6_i32 : i32 to vector<4x64xi32>
    %62 = arith.cmpi eq, %7, %61 : vector<4x64xi32>
    %63 = arith.select %62, %59, %54 : vector<4x64xi1>, vector<4x64xf32>
    %64 = vector.extract_strided_slice %5 {offsets = [24, 0], sizes = [4, 64], strides = [1, 1]} : vector<48x64xf32> to vector<4x64xf32>
    %65 = arith.truncf %59 : vector<4x64xf32> to vector<4x64xbf16>
    %cst_24 = arith.constant dense<0.000000e+00> : vector<4x64xf32>
    %66 = tpu.matmul %65, %6, %cst_24 {dimension_numbers = #tpu.dot_dimension_numbers<[1], [0], [0], [1], [0, 0, 1, 1], [], []>} : vector<4x64xbf16>, vector<64x64xbf16>, vector<4x64xf32> -> vector<4x64xf32>
    %67 = arith.addf %64, %66 : vector<4x64xf32>
    %68 = math.tanh %67 : vector<4x64xf32>
    %c24 = arith.constant 24 : index
    %c0_25 = arith.constant 0 : index
    %69 = vector.load %arg9[%c24, %c0_25] : memref<48x64xf32, #tpu.memory_space<vmem>>, vector<4x64xf32>
    tpu.vector_store %arg9[%c24, %c0_25], %68 {strides = array<i32>} : memref<48x64xf32, #tpu.memory_space<vmem>>, vector<4x64xf32>,
    %c7_i32 = arith.constant 7 : i32
    %70 = vector.broadcast %c7_i32 : i32 to vector<4x64xi32>
    %71 = arith.cmpi eq, %7, %70 : vector<4x64xi32>
    %72 = arith.select %71, %68, %63 : vector<4x64xi1>, vector<4x64xf32>
    %73 = vector.extract_strided_slice %5 {offsets = [28, 0], sizes = [4, 64], strides = [1, 1]} : vector<48x64xf32> to vector<4x64xf32>
    %74 = arith.truncf %68 : vector<4x64xf32> to vector<4x64xbf16>
    %cst_26 = arith.constant dense<0.000000e+00> : vector<4x64xf32>
    %75 = tpu.matmul %74, %6, %cst_26 {dimension_numbers = #tpu.dot_dimension_numbers<[1], [0], [0], [1], [0, 0, 1, 1], [], []>} : vector<4x64xbf16>, vector<64x64xbf16>, vector<4x64xf32> -> vector<4x64xf32>
    %76 = arith.addf %73, %75 : vector<4x64xf32>
    %77 = math.tanh %76 : vector<4x64xf32>
    %c28 = arith.constant 28 : index
    %c0_27 = arith.constant 0 : index
    %78 = vector.load %arg9[%c28, %c0_27] : memref<48x64xf32, #tpu.memory_space<vmem>>, vector<4x64xf32>
    tpu.vector_store %arg9[%c28, %c0_27], %77 {strides = array<i32>} : memref<48x64xf32, #tpu.memory_space<vmem>>, vector<4x64xf32>,
    %c8_i32 = arith.constant 8 : i32
    %79 = vector.broadcast %c8_i32 : i32 to vector<4x64xi32>
    %80 = arith.cmpi eq, %7, %79 : vector<4x64xi32>
    %81 = arith.select %80, %77, %72 : vector<4x64xi1>, vector<4x64xf32>
    %82 = vector.extract_strided_slice %5 {offsets = [32, 0], sizes = [4, 64], strides = [1, 1]} : vector<48x64xf32> to vector<4x64xf32>
    %83 = arith.truncf %77 : vector<4x64xf32> to vector<4x64xbf16>
    %cst_28 = arith.constant dense<0.000000e+00> : vector<4x64xf32>
    %84 = tpu.matmul %83, %6, %cst_28 {dimension_numbers = #tpu.dot_dimension_numbers<[1], [0], [0], [1], [0, 0, 1, 1], [], []>} : vector<4x64xbf16>, vector<64x64xbf16>, vector<4x64xf32> -> vector<4x64xf32>
    %85 = arith.addf %82, %84 : vector<4x64xf32>
    %86 = math.tanh %85 : vector<4x64xf32>
    %c32 = arith.constant 32 : index
    %c0_29 = arith.constant 0 : index
    %87 = vector.load %arg9[%c32, %c0_29] : memref<48x64xf32, #tpu.memory_space<vmem>>, vector<4x64xf32>
    tpu.vector_store %arg9[%c32, %c0_29], %86 {strides = array<i32>} : memref<48x64xf32, #tpu.memory_space<vmem>>, vector<4x64xf32>,
    %c9_i32 = arith.constant 9 : i32
    %88 = vector.broadcast %c9_i32 : i32 to vector<4x64xi32>
    %89 = arith.cmpi eq, %7, %88 : vector<4x64xi32>
    %90 = arith.select %89, %86, %81 : vector<4x64xi1>, vector<4x64xf32>
    %91 = vector.extract_strided_slice %5 {offsets = [36, 0], sizes = [4, 64], strides = [1, 1]} : vector<48x64xf32> to vector<4x64xf32>
    %92 = arith.truncf %86 : vector<4x64xf32> to vector<4x64xbf16>
    %cst_30 = arith.constant dense<0.000000e+00> : vector<4x64xf32>
    %93 = tpu.matmul %92, %6, %cst_30 {dimension_numbers = #tpu.dot_dimension_numbers<[1], [0], [0], [1], [0, 0, 1, 1], [], []>} : vector<4x64xbf16>, vector<64x64xbf16>, vector<4x64xf32> -> vector<4x64xf32>
    %94 = arith.addf %91, %93 : vector<4x64xf32>
    %95 = math.tanh %94 : vector<4x64xf32>
    %c36 = arith.constant 36 : index
    %c0_31 = arith.constant 0 : index
    %96 = vector.load %arg9[%c36, %c0_31] : memref<48x64xf32, #tpu.memory_space<vmem>>, vector<4x64xf32>
    tpu.vector_store %arg9[%c36, %c0_31], %95 {strides = array<i32>} : memref<48x64xf32, #tpu.memory_space<vmem>>, vector<4x64xf32>,
    %c10_i32 = arith.constant 10 : i32
    %97 = vector.broadcast %c10_i32 : i32 to vector<4x64xi32>
    %98 = arith.cmpi eq, %7, %97 : vector<4x64xi32>
    %99 = arith.select %98, %95, %90 : vector<4x64xi1>, vector<4x64xf32>
    %100 = vector.extract_strided_slice %5 {offsets = [40, 0], sizes = [4, 64], strides = [1, 1]} : vector<48x64xf32> to vector<4x64xf32>
    %101 = arith.truncf %95 : vector<4x64xf32> to vector<4x64xbf16>
    %cst_32 = arith.constant dense<0.000000e+00> : vector<4x64xf32>
    %102 = tpu.matmul %101, %6, %cst_32 {dimension_numbers = #tpu.dot_dimension_numbers<[1], [0], [0], [1], [0, 0, 1, 1], [], []>} : vector<4x64xbf16>, vector<64x64xbf16>, vector<4x64xf32> -> vector<4x64xf32>
    %103 = arith.addf %100, %102 : vector<4x64xf32>
    %104 = math.tanh %103 : vector<4x64xf32>
    %c40 = arith.constant 40 : index
    %c0_33 = arith.constant 0 : index
    %105 = vector.load %arg9[%c40, %c0_33] : memref<48x64xf32, #tpu.memory_space<vmem>>, vector<4x64xf32>
    tpu.vector_store %arg9[%c40, %c0_33], %104 {strides = array<i32>} : memref<48x64xf32, #tpu.memory_space<vmem>>, vector<4x64xf32>,
    %c11_i32 = arith.constant 11 : i32
    %106 = vector.broadcast %c11_i32 : i32 to vector<4x64xi32>
    %107 = arith.cmpi eq, %7, %106 : vector<4x64xi32>
    %108 = arith.select %107, %104, %99 : vector<4x64xi1>, vector<4x64xf32>
    %109 = vector.extract_strided_slice %5 {offsets = [44, 0], sizes = [4, 64], strides = [1, 1]} : vector<48x64xf32> to vector<4x64xf32>
    %110 = arith.truncf %104 : vector<4x64xf32> to vector<4x64xbf16>
    %cst_34 = arith.constant dense<0.000000e+00> : vector<4x64xf32>
    %111 = tpu.matmul %110, %6, %cst_34 {dimension_numbers = #tpu.dot_dimension_numbers<[1], [0], [0], [1], [0, 0, 1, 1], [], []>} : vector<4x64xbf16>, vector<64x64xbf16>, vector<4x64xf32> -> vector<4x64xf32>
    %112 = arith.addf %109, %111 : vector<4x64xf32>
    %113 = math.tanh %112 : vector<4x64xf32>
    %c44 = arith.constant 44 : index
    %c0_35 = arith.constant 0 : index
    %114 = vector.load %arg9[%c44, %c0_35] : memref<48x64xf32, #tpu.memory_space<vmem>>, vector<4x64xf32>
    tpu.vector_store %arg9[%c44, %c0_35], %113 {strides = array<i32>} : memref<48x64xf32, #tpu.memory_space<vmem>>, vector<4x64xf32>,
    %c12_i32 = arith.constant 12 : i32
    %115 = vector.broadcast %c12_i32 : i32 to vector<4x64xi32>
    %116 = arith.cmpi eq, %7, %115 : vector<4x64xi32>
    %117 = arith.select %116, %113, %108 : vector<4x64xi1>, vector<4x64xf32>
    %c0_36 = arith.constant 0 : index
    %c0_37 = arith.constant 0 : index
    %118 = vector.load %arg9[%c0_36, %c0_37] : memref<48x64xf32, #tpu.memory_space<vmem>>, vector<48x64xf32>
    %119 = arith.truncf %118 : vector<48x64xf32> to vector<48x64xbf16>
    %c64 = arith.constant 64 : index
    %c0_38 = arith.constant 0 : index
    %120 = vector.load %arg5[%c64, %c0_38] : memref<256x64xbf16, #tpu.memory_space<vmem>>, vector<64x64xbf16>
    %cst_39 = arith.constant dense<0.000000e+00> : vector<48x64xf32>
    %121 = tpu.matmul %119, %120, %cst_39 {dimension_numbers = #tpu.dot_dimension_numbers<[1], [0], [0], [1], [0, 0, 1, 1], [], []>} : vector<48x64xbf16>, vector<64x64xbf16>, vector<48x64xf32> -> vector<48x64xf32>
    %122 = vector.extract_strided_slice %117 {offsets = [0, 32], sizes = [4, 32], strides = [1, 1]} : vector<4x64xf32> to vector<4x32xf32>
    %123 = vector.extract_strided_slice %117 {offsets = [0, 0], sizes = [4, 32], strides = [1, 1]} : vector<4x64xf32> to vector<4x32xf32>
    %124 = tpu.concatenate %122, %123 in 1 : vector<4x32xf32>, vector<4x32xf32> -> vector<4x64xf32>
    %125 = arith.truncf %124 : vector<4x64xf32> to vector<4x64xbf16>
    %c128 = arith.constant 128 : index
    %c0_40 = arith.constant 0 : index
    %126 = vector.load %arg5[%c128, %c0_40] : memref<256x64xbf16, #tpu.memory_space<vmem>>, vector<64x64xbf16>
    %cst_41 = arith.constant dense<0.000000e+00> : vector<4x64xf32>
    %127 = tpu.matmul %125, %126, %cst_41 {dimension_numbers = #tpu.dot_dimension_numbers<[1], [0], [0], [1], [0, 0, 1, 1], [], []>} : vector<4x64xbf16>, vector<64x64xbf16>, vector<4x64xf32> -> vector<4x64xf32>
    %128 = tpu.concatenate %127, %127, %127, %127, %127, %127, %127, %127, %127, %127, %127, %127 in 0 : vector<4x64xf32>, vector<4x64xf32>, vector<4x64xf32>, vector<4x64xf32>, vector<4x64xf32>, vector<4x64xf32>, vector<4x64xf32>, vector<4x64xf32>, vector<4x64xf32>, vector<4x64xf32>, vector<4x64xf32>, vector<4x64xf32> -> vector<48x64xf32>
    %c1 = arith.constant 1 : index
    %c0_42 = arith.constant 0 : index
    %129 = vector.load %arg7[%c1, %c0_42] : memref<8x128xf32, #tpu.memory_space<vmem>>, vector<1x64xf32>
    %130 = arith.addf %121, %128 : vector<48x64xf32>
    %131 = math.tanh %130 : vector<48x64xf32>
    %132 = vector.broadcast %129 : vector<1x64xf32> to vector<48x64xf32>
    %133 = arith.mulf %131, %132 : vector<48x64xf32>
    %134 = vector.extract_strided_slice %133 {offsets = [0, 0], sizes = [48, 32], strides = [1, 1]} : vector<48x64xf32> to vector<48x32xf32>
    %cst_43 = arith.constant dense<0.000000e+00> : vector<48xf32>
    %135 = vector.multi_reduction <add>, %134, %cst_43 [1] : vector<48x32xf32> to vector<48xf32>
    %136 = vector.shape_cast %135 : vector<48xf32> to vector<48x1xf32>
    %137 = vector.extract_strided_slice %133 {offsets = [0, 32], sizes = [48, 32], strides = [1, 1]} : vector<48x64xf32> to vector<48x32xf32>
    %cst_44 = arith.constant dense<0.000000e+00> : vector<48xf32>
    %138 = vector.multi_reduction <add>, %137, %cst_44 [1] : vector<48x32xf32> to vector<48xf32>
    %139 = vector.shape_cast %138 : vector<48xf32> to vector<48x1xf32>
    %140 = tpu.concatenate %136, %139 in 1 : vector<48x1xf32>, vector<48x1xf32> -> vector<48x2xf32>
    %c0_45 = arith.constant 0 : index
    %c0_46 = arith.constant 0 : index
    %141 = vector.load %arg1[%c0_45, %c0_46] : memref<48x2xf32, #tpu.memory_space<vmem>>, vector<48x2xf32>
    %cst_47 = arith.constant 0.000000e+00 : f32
    %142 = vector.broadcast %cst_47 : f32 to vector<48x2xf32>
    %143 = arith.cmpf ogt, %141, %142 : vector<48x2xf32>
    %cst_48 = arith.constant -1.000000e+30 : f32
    %144 = vector.broadcast %cst_48 : f32 to vector<48x2xf32>
    %145 = arith.select %143, %140, %144 : vector<48x2xi1>, vector<48x2xf32>
    %cst_49 = arith.constant -1.000000e+30 : f32
    %146 = vector.broadcast %cst_49 : f32 to vector<4x2xf32>
    %147 = vector.extract_strided_slice %145 {offsets = [0, 0], sizes = [4, 2], strides = [1, 1]} : vector<48x2xf32> to vector<4x2xf32>
    %148 = arith.maximumf %146, %147 : vector<4x2xf32>
    %149 = vector.extract_strided_slice %145 {offsets = [4, 0], sizes = [4, 2], strides = [1, 1]} : vector<48x2xf32> to vector<4x2xf32>
    %150 = arith.maximumf %148, %149 : vector<4x2xf32>
    %151 = vector.extract_strided_slice %145 {offsets = [8, 0], sizes = [4, 2], strides = [1, 1]} : vector<48x2xf32> to vector<4x2xf32>
    %152 = arith.maximumf %150, %151 : vector<4x2xf32>
    %153 = vector.extract_strided_slice %145 {offsets = [12, 0], sizes = [4, 2], strides = [1, 1]} : vector<48x2xf32> to vector<4x2xf32>
    %154 = arith.maximumf %152, %153 : vector<4x2xf32>
    %155 = vector.extract_strided_slice %145 {offsets = [16, 0], sizes = [4, 2], strides = [1, 1]} : vector<48x2xf32> to vector<4x2xf32>
    %156 = arith.maximumf %154, %155 : vector<4x2xf32>
    %157 = vector.extract_strided_slice %145 {offsets = [20, 0], sizes = [4, 2], strides = [1, 1]} : vector<48x2xf32> to vector<4x2xf32>
    %158 = arith.maximumf %156, %157 : vector<4x2xf32>
    %159 = vector.extract_strided_slice %145 {offsets = [24, 0], sizes = [4, 2], strides = [1, 1]} : vector<48x2xf32> to vector<4x2xf32>
    %160 = arith.maximumf %158, %159 : vector<4x2xf32>
    %161 = vector.extract_strided_slice %145 {offsets = [28, 0], sizes = [4, 2], strides = [1, 1]} : vector<48x2xf32> to vector<4x2xf32>
    %162 = arith.maximumf %160, %161 : vector<4x2xf32>
    %163 = vector.extract_strided_slice %145 {offsets = [32, 0], sizes = [4, 2], strides = [1, 1]} : vector<48x2xf32> to vector<4x2xf32>
    %164 = arith.maximumf %162, %163 : vector<4x2xf32>
    %165 = vector.extract_strided_slice %145 {offsets = [36, 0], sizes = [4, 2], strides = [1, 1]} : vector<48x2xf32> to vector<4x2xf32>
    %166 = arith.maximumf %164, %165 : vector<4x2xf32>
    %167 = vector.extract_strided_slice %145 {offsets = [40, 0], sizes = [4, 2], strides = [1, 1]} : vector<48x2xf32> to vector<4x2xf32>
    %168 = arith.maximumf %166, %167 : vector<4x2xf32>
    %169 = vector.extract_strided_slice %145 {offsets = [44, 0], sizes = [4, 2], strides = [1, 1]} : vector<48x2xf32> to vector<4x2xf32>
    %170 = arith.maximumf %168, %169 : vector<4x2xf32>
    %171 = tpu.iota {dimensions = array<i32: 1>} : vector<4x64xi32>
    %cst_50 = arith.constant 0.000000e+00 : f32
    %172 = vector.broadcast %cst_50 : f32 to vector<4x2xf32>
    %cst_51 = arith.constant 0.000000e+00 : f32
    %173 = vector.broadcast %cst_51 : f32 to vector<4x64xf32>
    %174 = vector.extract_strided_slice %145 {offsets = [0, 0], sizes = [4, 2], strides = [1, 1]} : vector<48x2xf32> to vector<4x2xf32>
    %175 = arith.subf %174, %170 : vector<4x2xf32>
    %176 = math.exp %175 : vector<4x2xf32>
    %177 = arith.addf %172, %176 : vector<4x2xf32>
    %c32_i32 = arith.constant 32 : i32
    %178 = vector.broadcast %c32_i32 : i32 to vector<4x64xi32>
    %179 = arith.cmpi slt, %171, %178 : vector<4x64xi32>
    %180 = vector.extract_strided_slice %176 {offsets = [0, 0], sizes = [4, 1], strides = [1, 1]} : vector<4x2xf32> to vector<4x1xf32>
    %181 = vector.extract_strided_slice %176 {offsets = [0, 1], sizes = [4, 1], strides = [1, 1]} : vector<4x2xf32> to vector<4x1xf32>
    %182 = vector.shape_cast %180 : vector<4x1xf32> to vector<4x1xf32>
    %183 = vector.broadcast %182 : vector<4x1xf32> to vector<4x64xf32>
    %184 = vector.shape_cast %181 : vector<4x1xf32> to vector<4x1xf32>
    %185 = vector.broadcast %184 : vector<4x1xf32> to vector<4x64xf32>
    %186 = arith.select %179, %183, %185 : vector<4x64xi1>, vector<4x64xf32>
    %187 = vector.extract_strided_slice %118 {offsets = [0, 0], sizes = [4, 64], strides = [1, 1]} : vector<48x64xf32> to vector<4x64xf32>
    %188 = arith.mulf %186, %187 : vector<4x64xf32>
    %189 = arith.addf %173, %188 : vector<4x64xf32>
    %190 = vector.extract_strided_slice %145 {offsets = [4, 0], sizes = [4, 2], strides = [1, 1]} : vector<48x2xf32> to vector<4x2xf32>
    %191 = arith.subf %190, %170 : vector<4x2xf32>
    %192 = math.exp %191 : vector<4x2xf32>
    %193 = arith.addf %177, %192 : vector<4x2xf32>
    %c32_i32_52 = arith.constant 32 : i32
    %194 = vector.broadcast %c32_i32_52 : i32 to vector<4x64xi32>
    %195 = arith.cmpi slt, %171, %194 : vector<4x64xi32>
    %196 = vector.extract_strided_slice %192 {offsets = [0, 0], sizes = [4, 1], strides = [1, 1]} : vector<4x2xf32> to vector<4x1xf32>
    %197 = vector.extract_strided_slice %192 {offsets = [0, 1], sizes = [4, 1], strides = [1, 1]} : vector<4x2xf32> to vector<4x1xf32>
    %198 = vector.shape_cast %196 : vector<4x1xf32> to vector<4x1xf32>
    %199 = vector.broadcast %198 : vector<4x1xf32> to vector<4x64xf32>
    %200 = vector.shape_cast %197 : vector<4x1xf32> to vector<4x1xf32>
    %201 = vector.broadcast %200 : vector<4x1xf32> to vector<4x64xf32>
    %202 = arith.select %195, %199, %201 : vector<4x64xi1>, vector<4x64xf32>
    %203 = vector.extract_strided_slice %118 {offsets = [4, 0], sizes = [4, 64], strides = [1, 1]} : vector<48x64xf32> to vector<4x64xf32>
    %204 = arith.mulf %202, %203 : vector<4x64xf32>
    %205 = arith.addf %189, %204 : vector<4x64xf32>
    %206 = vector.extract_strided_slice %145 {offsets = [8, 0], sizes = [4, 2], strides = [1, 1]} : vector<48x2xf32> to vector<4x2xf32>
    %207 = arith.subf %206, %170 : vector<4x2xf32>
    %208 = math.exp %207 : vector<4x2xf32>
    %209 = arith.addf %193, %208 : vector<4x2xf32>
    %c32_i32_53 = arith.constant 32 : i32
    %210 = vector.broadcast %c32_i32_53 : i32 to vector<4x64xi32>
    %211 = arith.cmpi slt, %171, %210 : vector<4x64xi32>
    %212 = vector.extract_strided_slice %208 {offsets = [0, 0], sizes = [4, 1], strides = [1, 1]} : vector<4x2xf32> to vector<4x1xf32>
    %213 = vector.extract_strided_slice %208 {offsets = [0, 1], sizes = [4, 1], strides = [1, 1]} : vector<4x2xf32> to vector<4x1xf32>
    %214 = vector.shape_cast %212 : vector<4x1xf32> to vector<4x1xf32>
    %215 = vector.broadcast %214 : vector<4x1xf32> to vector<4x64xf32>
    %216 = vector.shape_cast %213 : vector<4x1xf32> to vector<4x1xf32>
    %217 = vector.broadcast %216 : vector<4x1xf32> to vector<4x64xf32>
    %218 = arith.select %211, %215, %217 : vector<4x64xi1>, vector<4x64xf32>
    %219 = vector.extract_strided_slice %118 {offsets = [8, 0], sizes = [4, 64], strides = [1, 1]} : vector<48x64xf32> to vector<4x64xf32>
    %220 = arith.mulf %218, %219 : vector<4x64xf32>
    %221 = arith.addf %205, %220 : vector<4x64xf32>
    %222 = vector.extract_strided_slice %145 {offsets = [12, 0], sizes = [4, 2], strides = [1, 1]} : vector<48x2xf32> to vector<4x2xf32>
    %223 = arith.subf %222, %170 : vector<4x2xf32>
    %224 = math.exp %223 : vector<4x2xf32>
    %225 = arith.addf %209, %224 : vector<4x2xf32>
    %c32_i32_54 = arith.constant 32 : i32
    %226 = vector.broadcast %c32_i32_54 : i32 to vector<4x64xi32>
    %227 = arith.cmpi slt, %171, %226 : vector<4x64xi32>
    %228 = vector.extract_strided_slice %224 {offsets = [0, 0], sizes = [4, 1], strides = [1, 1]} : vector<4x2xf32> to vector<4x1xf32>
    %229 = vector.extract_strided_slice %224 {offsets = [0, 1], sizes = [4, 1], strides = [1, 1]} : vector<4x2xf32> to vector<4x1xf32>
    %230 = vector.shape_cast %228 : vector<4x1xf32> to vector<4x1xf32>
    %231 = vector.broadcast %230 : vector<4x1xf32> to vector<4x64xf32>
    %232 = vector.shape_cast %229 : vector<4x1xf32> to vector<4x1xf32>
    %233 = vector.broadcast %232 : vector<4x1xf32> to vector<4x64xf32>
    %234 = arith.select %227, %231, %233 : vector<4x64xi1>, vector<4x64xf32>
    %235 = vector.extract_strided_slice %118 {offsets = [12, 0], sizes = [4, 64], strides = [1, 1]} : vector<48x64xf32> to vector<4x64xf32>
    %236 = arith.mulf %234, %235 : vector<4x64xf32>
    %237 = arith.addf %221, %236 : vector<4x64xf32>
    %238 = vector.extract_strided_slice %145 {offsets = [16, 0], sizes = [4, 2], strides = [1, 1]} : vector<48x2xf32> to vector<4x2xf32>
    %239 = arith.subf %238, %170 : vector<4x2xf32>
    %240 = math.exp %239 : vector<4x2xf32>
    %241 = arith.addf %225, %240 : vector<4x2xf32>
    %c32_i32_55 = arith.constant 32 : i32
    %242 = vector.broadcast %c32_i32_55 : i32 to vector<4x64xi32>
    %243 = arith.cmpi slt, %171, %242 : vector<4x64xi32>
    %244 = vector.extract_strided_slice %240 {offsets = [0, 0], sizes = [4, 1], strides = [1, 1]} : vector<4x2xf32> to vector<4x1xf32>
    %245 = vector.extract_strided_slice %240 {offsets = [0, 1], sizes = [4, 1], strides = [1, 1]} : vector<4x2xf32> to vector<4x1xf32>
    %246 = vector.shape_cast %244 : vector<4x1xf32> to vector<4x1xf32>
    %247 = vector.broadcast %246 : vector<4x1xf32> to vector<4x64xf32>
    %248 = vector.shape_cast %245 : vector<4x1xf32> to vector<4x1xf32>
    %249 = vector.broadcast %248 : vector<4x1xf32> to vector<4x64xf32>
    %250 = arith.select %243, %247, %249 : vector<4x64xi1>, vector<4x64xf32>
    %251 = vector.extract_strided_slice %118 {offsets = [16, 0], sizes = [4, 64], strides = [1, 1]} : vector<48x64xf32> to vector<4x64xf32>
    %252 = arith.mulf %250, %251 : vector<4x64xf32>
    %253 = arith.addf %237, %252 : vector<4x64xf32>
    %254 = vector.extract_strided_slice %145 {offsets = [20, 0], sizes = [4, 2], strides = [1, 1]} : vector<48x2xf32> to vector<4x2xf32>
    %255 = arith.subf %254, %170 : vector<4x2xf32>
    %256 = math.exp %255 : vector<4x2xf32>
    %257 = arith.addf %241, %256 : vector<4x2xf32>
    %c32_i32_56 = arith.constant 32 : i32
    %258 = vector.broadcast %c32_i32_56 : i32 to vector<4x64xi32>
    %259 = arith.cmpi slt, %171, %258 : vector<4x64xi32>
    %260 = vector.extract_strided_slice %256 {offsets = [0, 0], sizes = [4, 1], strides = [1, 1]} : vector<4x2xf32> to vector<4x1xf32>
    %261 = vector.extract_strided_slice %256 {offsets = [0, 1], sizes = [4, 1], strides = [1, 1]} : vector<4x2xf32> to vector<4x1xf32>
    %262 = vector.shape_cast %260 : vector<4x1xf32> to vector<4x1xf32>
    %263 = vector.broadcast %262 : vector<4x1xf32> to vector<4x64xf32>
    %264 = vector.shape_cast %261 : vector<4x1xf32> to vector<4x1xf32>
    %265 = vector.broadcast %264 : vector<4x1xf32> to vector<4x64xf32>
    %266 = arith.select %259, %263, %265 : vector<4x64xi1>, vector<4x64xf32>
    %267 = vector.extract_strided_slice %118 {offsets = [20, 0], sizes = [4, 64], strides = [1, 1]} : vector<48x64xf32> to vector<4x64xf32>
    %268 = arith.mulf %266, %267 : vector<4x64xf32>
    %269 = arith.addf %253, %268 : vector<4x64xf32>
    %270 = vector.extract_strided_slice %145 {offsets = [24, 0], sizes = [4, 2], strides = [1, 1]} : vector<48x2xf32> to vector<4x2xf32>
    %271 = arith.subf %270, %170 : vector<4x2xf32>
    %272 = math.exp %271 : vector<4x2xf32>
    %273 = arith.addf %257, %272 : vector<4x2xf32>
    %c32_i32_57 = arith.constant 32 : i32
    %274 = vector.broadcast %c32_i32_57 : i32 to vector<4x64xi32>
    %275 = arith.cmpi slt, %171, %274 : vector<4x64xi32>
    %276 = vector.extract_strided_slice %272 {offsets = [0, 0], sizes = [4, 1], strides = [1, 1]} : vector<4x2xf32> to vector<4x1xf32>
    %277 = vector.extract_strided_slice %272 {offsets = [0, 1], sizes = [4, 1], strides = [1, 1]} : vector<4x2xf32> to vector<4x1xf32>
    %278 = vector.shape_cast %276 : vector<4x1xf32> to vector<4x1xf32>
    %279 = vector.broadcast %278 : vector<4x1xf32> to vector<4x64xf32>
    %280 = vector.shape_cast %277 : vector<4x1xf32> to vector<4x1xf32>
    %281 = vector.broadcast %280 : vector<4x1xf32> to vector<4x64xf32>
    %282 = arith.select %275, %279, %281 : vector<4x64xi1>, vector<4x64xf32>
    %283 = vector.extract_strided_slice %118 {offsets = [24, 0], sizes = [4, 64], strides = [1, 1]} : vector<48x64xf32> to vector<4x64xf32>
    %284 = arith.mulf %282, %283 : vector<4x64xf32>
    %285 = arith.addf %269, %284 : vector<4x64xf32>
    %286 = vector.extract_strided_slice %145 {offsets = [28, 0], sizes = [4, 2], strides = [1, 1]} : vector<48x2xf32> to vector<4x2xf32>
    %287 = arith.subf %286, %170 : vector<4x2xf32>
    %288 = math.exp %287 : vector<4x2xf32>
    %289 = arith.addf %273, %288 : vector<4x2xf32>
    %c32_i32_58 = arith.constant 32 : i32
    %290 = vector.broadcast %c32_i32_58 : i32 to vector<4x64xi32>
    %291 = arith.cmpi slt, %171, %290 : vector<4x64xi32>
    %292 = vector.extract_strided_slice %288 {offsets = [0, 0], sizes = [4, 1], strides = [1, 1]} : vector<4x2xf32> to vector<4x1xf32>
    %293 = vector.extract_strided_slice %288 {offsets = [0, 1], sizes = [4, 1], strides = [1, 1]} : vector<4x2xf32> to vector<4x1xf32>
    %294 = vector.shape_cast %292 : vector<4x1xf32> to vector<4x1xf32>
    %295 = vector.broadcast %294 : vector<4x1xf32> to vector<4x64xf32>
    %296 = vector.shape_cast %293 : vector<4x1xf32> to vector<4x1xf32>
    %297 = vector.broadcast %296 : vector<4x1xf32> to vector<4x64xf32>
    %298 = arith.select %291, %295, %297 : vector<4x64xi1>, vector<4x64xf32>
    %299 = vector.extract_strided_slice %118 {offsets = [28, 0], sizes = [4, 64], strides = [1, 1]} : vector<48x64xf32> to vector<4x64xf32>
    %300 = arith.mulf %298, %299 : vector<4x64xf32>
    %301 = arith.addf %285, %300 : vector<4x64xf32>
    %302 = vector.extract_strided_slice %145 {offsets = [32, 0], sizes = [4, 2], strides = [1, 1]} : vector<48x2xf32> to vector<4x2xf32>
    %303 = arith.subf %302, %170 : vector<4x2xf32>
    %304 = math.exp %303 : vector<4x2xf32>
    %305 = arith.addf %289, %304 : vector<4x2xf32>
    %c32_i32_59 = arith.constant 32 : i32
    %306 = vector.broadcast %c32_i32_59 : i32 to vector<4x64xi32>
    %307 = arith.cmpi slt, %171, %306 : vector<4x64xi32>
    %308 = vector.extract_strided_slice %304 {offsets = [0, 0], sizes = [4, 1], strides = [1, 1]} : vector<4x2xf32> to vector<4x1xf32>
    %309 = vector.extract_strided_slice %304 {offsets = [0, 1], sizes = [4, 1], strides = [1, 1]} : vector<4x2xf32> to vector<4x1xf32>
    %310 = vector.shape_cast %308 : vector<4x1xf32> to vector<4x1xf32>
    %311 = vector.broadcast %310 : vector<4x1xf32> to vector<4x64xf32>
    %312 = vector.shape_cast %309 : vector<4x1xf32> to vector<4x1xf32>
    %313 = vector.broadcast %312 : vector<4x1xf32> to vector<4x64xf32>
    %314 = arith.select %307, %311, %313 : vector<4x64xi1>, vector<4x64xf32>
    %315 = vector.extract_strided_slice %118 {offsets = [32, 0], sizes = [4, 64], strides = [1, 1]} : vector<48x64xf32> to vector<4x64xf32>
    %316 = arith.mulf %314, %315 : vector<4x64xf32>
    %317 = arith.addf %301, %316 : vector<4x64xf32>
    %318 = vector.extract_strided_slice %145 {offsets = [36, 0], sizes = [4, 2], strides = [1, 1]} : vector<48x2xf32> to vector<4x2xf32>
    %319 = arith.subf %318, %170 : vector<4x2xf32>
    %320 = math.exp %319 : vector<4x2xf32>
    %321 = arith.addf %305, %320 : vector<4x2xf32>
    %c32_i32_60 = arith.constant 32 : i32
    %322 = vector.broadcast %c32_i32_60 : i32 to vector<4x64xi32>
    %323 = arith.cmpi slt, %171, %322 : vector<4x64xi32>
    %324 = vector.extract_strided_slice %320 {offsets = [0, 0], sizes = [4, 1], strides = [1, 1]} : vector<4x2xf32> to vector<4x1xf32>
    %325 = vector.extract_strided_slice %320 {offsets = [0, 1], sizes = [4, 1], strides = [1, 1]} : vector<4x2xf32> to vector<4x1xf32>
    %326 = vector.shape_cast %324 : vector<4x1xf32> to vector<4x1xf32>
    %327 = vector.broadcast %326 : vector<4x1xf32> to vector<4x64xf32>
    %328 = vector.shape_cast %325 : vector<4x1xf32> to vector<4x1xf32>
    %329 = vector.broadcast %328 : vector<4x1xf32> to vector<4x64xf32>
    %330 = arith.select %323, %327, %329 : vector<4x64xi1>, vector<4x64xf32>
    %331 = vector.extract_strided_slice %118 {offsets = [36, 0], sizes = [4, 64], strides = [1, 1]} : vector<48x64xf32> to vector<4x64xf32>
    %332 = arith.mulf %330, %331 : vector<4x64xf32>
    %333 = arith.addf %317, %332 : vector<4x64xf32>
    %334 = vector.extract_strided_slice %145 {offsets = [40, 0], sizes = [4, 2], strides = [1, 1]} : vector<48x2xf32> to vector<4x2xf32>
    %335 = arith.subf %334, %170 : vector<4x2xf32>
    %336 = math.exp %335 : vector<4x2xf32>
    %337 = arith.addf %321, %336 : vector<4x2xf32>
    %c32_i32_61 = arith.constant 32 : i32
    %338 = vector.broadcast %c32_i32_61 : i32 to vector<4x64xi32>
    %339 = arith.cmpi slt, %171, %338 : vector<4x64xi32>
    %340 = vector.extract_strided_slice %336 {offsets = [0, 0], sizes = [4, 1], strides = [1, 1]} : vector<4x2xf32> to vector<4x1xf32>
    %341 = vector.extract_strided_slice %336 {offsets = [0, 1], sizes = [4, 1], strides = [1, 1]} : vector<4x2xf32> to vector<4x1xf32>
    %342 = vector.shape_cast %340 : vector<4x1xf32> to vector<4x1xf32>
    %343 = vector.broadcast %342 : vector<4x1xf32> to vector<4x64xf32>
    %344 = vector.shape_cast %341 : vector<4x1xf32> to vector<4x1xf32>
    %345 = vector.broadcast %344 : vector<4x1xf32> to vector<4x64xf32>
    %346 = arith.select %339, %343, %345 : vector<4x64xi1>, vector<4x64xf32>
    %347 = vector.extract_strided_slice %118 {offsets = [40, 0], sizes = [4, 64], strides = [1, 1]} : vector<48x64xf32> to vector<4x64xf32>
    %348 = arith.mulf %346, %347 : vector<4x64xf32>
    %349 = arith.addf %333, %348 : vector<4x64xf32>
    %350 = vector.extract_strided_slice %145 {offsets = [44, 0], sizes = [4, 2], strides = [1, 1]} : vector<48x2xf32> to vector<4x2xf32>
    %351 = arith.subf %350, %170 : vector<4x2xf32>
    %352 = math.exp %351 : vector<4x2xf32>
    %353 = arith.addf %337, %352 : vector<4x2xf32>
    %c32_i32_62 = arith.constant 32 : i32
    %354 = vector.broadcast %c32_i32_62 : i32 to vector<4x64xi32>
    %355 = arith.cmpi slt, %171, %354 : vector<4x64xi32>
    %356 = vector.extract_strided_slice %352 {offsets = [0, 0], sizes = [4, 1], strides = [1, 1]} : vector<4x2xf32> to vector<4x1xf32>
    %357 = vector.extract_strided_slice %352 {offsets = [0, 1], sizes = [4, 1], strides = [1, 1]} : vector<4x2xf32> to vector<4x1xf32>
    %358 = vector.shape_cast %356 : vector<4x1xf32> to vector<4x1xf32>
    %359 = vector.broadcast %358 : vector<4x1xf32> to vector<4x64xf32>
    %360 = vector.shape_cast %357 : vector<4x1xf32> to vector<4x1xf32>
    %361 = vector.broadcast %360 : vector<4x1xf32> to vector<4x64xf32>
    %362 = arith.select %355, %359, %361 : vector<4x64xi1>, vector<4x64xf32>
    %363 = vector.extract_strided_slice %118 {offsets = [44, 0], sizes = [4, 64], strides = [1, 1]} : vector<48x64xf32> to vector<4x64xf32>
    %364 = arith.mulf %362, %363 : vector<4x64xf32>
    %365 = arith.addf %349, %364 : vector<4x64xf32>
    %366 = tpu.reciprocal %353 {approx = true} : vector<4x2xf32> -> vector<4x2xf32>
    %c32_i32_63 = arith.constant 32 : i32
    %367 = vector.broadcast %c32_i32_63 : i32 to vector<4x64xi32>
    %368 = arith.cmpi slt, %171, %367 : vector<4x64xi32>
    %369 = vector.extract_strided_slice %366 {offsets = [0, 0], sizes = [4, 1], strides = [1, 1]} : vector<4x2xf32> to vector<4x1xf32>
    %370 = vector.extract_strided_slice %366 {offsets = [0, 1], sizes = [4, 1], strides = [1, 1]} : vector<4x2xf32> to vector<4x1xf32>
    %371 = vector.shape_cast %369 : vector<4x1xf32> to vector<4x1xf32>
    %372 = vector.broadcast %371 : vector<4x1xf32> to vector<4x64xf32>
    %373 = vector.shape_cast %370 : vector<4x1xf32> to vector<4x1xf32>
    %374 = vector.broadcast %373 : vector<4x1xf32> to vector<4x64xf32>
    %375 = arith.select %368, %372, %374 : vector<4x64xi1>, vector<4x64xf32>
    %376 = arith.mulf %365, %375 : vector<4x64xf32>
    %c2 = arith.constant 2 : index
    %c0_64 = arith.constant 0 : index
    %377 = vector.load %arg7[%c2, %c0_64] : memref<8x128xf32, #tpu.memory_space<vmem>>, vector<1x64xf32>
    %378 = vector.broadcast %377 : vector<1x64xf32> to vector<4x64xf32>
    %379 = arith.mulf %376, %378 : vector<4x64xf32>
    %c3 = arith.constant 3 : index
    %c0_65 = arith.constant 0 : index
    %380 = vector.load %arg7[%c3, %c0_65] : memref<8x128xf32, #tpu.memory_space<vmem>>, vector<1x64xf32>
    %381 = vector.broadcast %380 : vector<1x64xf32> to vector<4x64xf32>
    %382 = arith.addf %379, %381 : vector<4x64xf32>
    %c192 = arith.constant 192 : index
    %c0_66 = arith.constant 0 : index
    %383 = vector.load %arg5[%c192, %c0_66] : memref<256x64xbf16, #tpu.memory_space<vmem>>, vector<64x32xbf16>
    %384 = arith.truncf %382 : vector<4x64xf32> to vector<4x64xbf16>
    %cst_67 = arith.constant dense<0.000000e+00> : vector<4x32xf32>
    %385 = tpu.matmul %384, %383, %cst_67 {dimension_numbers = #tpu.dot_dimension_numbers<[1], [0], [0], [1], [0, 0, 1, 1], [], []>} : vector<4x64xbf16>, vector<64x32xbf16>, vector<4x32xf32> -> vector<4x32xf32>
    %c4_68 = arith.constant 4 : index
    %c0_69 = arith.constant 0 : index
    %386 = vector.load %arg7[%c4_68, %c0_69] : memref<8x128xf32, #tpu.memory_space<vmem>>, vector<1x32xf32>
    %387 = vector.broadcast %386 : vector<1x32xf32> to vector<4x32xf32>
    %388 = arith.addf %385, %387 : vector<4x32xf32>
    %389 = vector.extract_strided_slice %382 {offsets = [0, 0], sizes = [4, 32], strides = [1, 1]} : vector<4x64xf32> to vector<4x32xf32>
    %390 = vector.extract_strided_slice %382 {offsets = [0, 32], sizes = [4, 32], strides = [1, 1]} : vector<4x64xf32> to vector<4x32xf32>
    %391 = arith.mulf %389, %390 : vector<4x32xf32>
    %392 = arith.addf %389, %390 : vector<4x32xf32>
    %393 = tpu.concatenate %388, %391, %392 in 1 : vector<4x32xf32>, vector<4x32xf32>, vector<4x32xf32> -> vector<4x96xf32>
    %394 = arith.truncf %393 : vector<4x96xf32> to vector<4x96xbf16>
    %c0_70 = arith.constant 0 : index
    %c0_71 = arith.constant 0 : index
    %395 = vector.load %arg6[%c0_70, %c0_71] : memref<288x128xbf16, #tpu.memory_space<vmem>>, vector<96x96xbf16>
    %cst_72 = arith.constant dense<0.000000e+00> : vector<4x96xf32>
    %396 = tpu.matmul %394, %395, %cst_72 {dimension_numbers = #tpu.dot_dimension_numbers<[1], [0], [0], [1], [0, 0, 1, 1], [], []>} : vector<4x96xbf16>, vector<96x96xbf16>, vector<4x96xf32> -> vector<4x96xf32>
    %c5 = arith.constant 5 : index
    %c0_73 = arith.constant 0 : index
    %397 = vector.load %arg7[%c5, %c0_73] : memref<8x128xf32, #tpu.memory_space<vmem>>, vector<1x96xf32>
    %398 = vector.broadcast %397 : vector<1x96xf32> to vector<4x96xf32>
    %399 = arith.addf %396, %398 : vector<4x96xf32>
    %cst_74 = arith.constant 0.000000e+00 : f32
    %400 = vector.broadcast %cst_74 : f32 to vector<4x96xf32>
    %401 = arith.maximumf %399, %400 : vector<4x96xf32>
    %402 = arith.truncf %401 : vector<4x96xf32> to vector<4x96xbf16>
    %c96 = arith.constant 96 : index
    %c0_75 = arith.constant 0 : index
    %403 = vector.load %arg6[%c96, %c0_75] : memref<288x128xbf16, #tpu.memory_space<vmem>>, vector<96x96xbf16>
    %cst_76 = arith.constant dense<0.000000e+00> : vector<4x96xf32>
    %404 = tpu.matmul %402, %403, %cst_76 {dimension_numbers = #tpu.dot_dimension_numbers<[1], [0], [0], [1], [0, 0, 1, 1], [], []>} : vector<4x96xbf16>, vector<96x96xbf16>, vector<4x96xf32> -> vector<4x96xf32>
    %c6 = arith.constant 6 : index
    %c0_77 = arith.constant 0 : index
    %405 = vector.load %arg7[%c6, %c0_77] : memref<8x128xf32, #tpu.memory_space<vmem>>, vector<1x96xf32>
    %406 = vector.broadcast %405 : vector<1x96xf32> to vector<4x96xf32>
    %407 = arith.addf %404, %406 : vector<4x96xf32>
    %cst_78 = arith.constant 0.000000e+00 : f32
    %408 = vector.broadcast %cst_78 : f32 to vector<4x96xf32>
    %409 = arith.maximumf %407, %408 : vector<4x96xf32>
    %410 = arith.truncf %409 : vector<4x96xf32> to vector<4x96xbf16>
    %c192_79 = arith.constant 192 : index
    %c0_80 = arith.constant 0 : index
    %411 = vector.load %arg6[%c192_79, %c0_80] : memref<288x128xbf16, #tpu.memory_space<vmem>>, vector<96x128xbf16>
    %cst_81 = arith.constant dense<0.000000e+00> : vector<4x128xf32>
    %412 = tpu.matmul %410, %411, %cst_81 {dimension_numbers = #tpu.dot_dimension_numbers<[1], [0], [0], [1], [0, 0, 1, 1], [], []>} : vector<4x96xbf16>, vector<96x128xbf16>, vector<4x128xf32> -> vector<4x128xf32>
    %c7 = arith.constant 7 : index
    %c0_82 = arith.constant 0 : index
    %413 = vector.load %arg7[%c7, %c0_82] : memref<8x128xf32, #tpu.memory_space<vmem>>, vector<1x128xf32>
    %414 = vector.broadcast %413 : vector<1x128xf32> to vector<4x128xf32>
    %415 = arith.addf %412, %414 : vector<4x128xf32>
    %416 = arith.negf %415 : vector<4x128xf32>
    %417 = math.exp %416 : vector<4x128xf32>
    %cst_83 = arith.constant 1.000000e+00 : f32
    %418 = vector.broadcast %cst_83 : f32 to vector<4x128xf32>
    %419 = arith.addf %418, %417 : vector<4x128xf32>
    %420 = arith.divf %418, %419 : vector<4x128xf32>
    %421 = vector.extract_strided_slice %420 {offsets = [0, 0], sizes = [4, 1], strides = [1, 1]} : vector<4x128xf32> to vector<4x1xf32>
    %422 = vector.extract_strided_slice %420 {offsets = [0, 1], sizes = [4, 1], strides = [1, 1]} : vector<4x128xf32> to vector<4x1xf32>
    %c0_84 = arith.constant 0 : index
    %c0_85 = arith.constant 0 : index
    %423 = vector.load %arg3[%c0_84, %c0_85] : memref<4x1xf32, #tpu.memory_space<vmem>>, vector<4x1xf32>
    %cst_86 = arith.constant 5.000000e-01 : f32
    %424 = vector.broadcast %cst_86 : f32 to vector<4x1xf32>
    %425 = arith.mulf %424, %422 : vector<4x1xf32>
    %426 = arith.subf %421, %425 : vector<4x1xf32>
    %cst_87 = arith.constant 0.000000e+00 : f32
    %427 = vector.broadcast %cst_87 : f32 to vector<4x1xf32>
    %428 = arith.maximumf %426, %427 : vector<4x1xf32>
    %429 = arith.mulf %428, %423 : vector<4x1xf32>
    %cst_88 = arith.constant 5.000000e-01 : f32
    %430 = vector.broadcast %cst_88 : f32 to vector<4x1xf32>
    %431 = arith.mulf %430, %422 : vector<4x1xf32>
    %432 = arith.addf %421, %431 : vector<4x1xf32>
    %cst_89 = arith.constant 9.990000e-01 : f32
    %433 = vector.broadcast %cst_89 : f32 to vector<4x1xf32>
    %434 = arith.minimumf %432, %433 : vector<4x1xf32>
    %435 = arith.mulf %434, %423 : vector<4x1xf32>
    %436 = tpu.iota {dimensions = array<i32: 1>} : vector<4x128xi32>
    %c2_i32_90 = arith.constant 2 : i32
    %437 = vector.broadcast %c2_i32_90 : i32 to vector<4x128xi32>
    %438 = arith.cmpi eq, %436, %437 : vector<4x128xi32>
    %c3_i32_91 = arith.constant 3 : i32
    %439 = vector.broadcast %c3_i32_91 : i32 to vector<4x128xi32>
    %440 = arith.cmpi eq, %436, %439 : vector<4x128xi32>
    %441 = vector.shape_cast %435 : vector<4x1xf32> to vector<4x1xf32>
    %442 = vector.broadcast %441 : vector<4x1xf32> to vector<4x128xf32>
    %443 = arith.select %440, %442, %420 : vector<4x128xi1>, vector<4x128xf32>
    %444 = vector.shape_cast %429 : vector<4x1xf32> to vector<4x1xf32>
    %445 = vector.broadcast %444 : vector<4x1xf32> to vector<4x128xf32>
    %446 = arith.select %438, %445, %443 : vector<4x128xi1>, vector<4x128xf32>
    %c0_92 = arith.constant 0 : index
    %c0_93 = arith.constant 0 : index
    %447 = vector.load %arg8[%c0_92, %c0_93] : memref<4x128xf32, #tpu.memory_space<vmem>>, vector<4x128xf32>
    tpu.vector_store %arg8[%c0_92, %c0_93], %446 {strides = array<i32>} : memref<4x128xf32, #tpu.memory_space<vmem>>, vector<4x128xf32>,
    return
  }
}

</mosaic_0001>

<llo_original>
// kernel: sentence_localizer_forward.1
$region0: #{sentence_localizer_forward.1}
  #allocation0 [shape = 'u32[]', space=smem, size = 0x4, offset = 0x4, fixed_abs, tag = 'smem constant byte address 0x4 - core index']
  #allocation1 [shape = 'u32[144,128]{1,0:T(1,128)}', space=vmem, size = 0x12000, scoped, tag = 'internal scratch']
  #allocation2 [shape = 'f32[48,64]{1,0:T(8,128)}', space=vmem, size = 0x6000, scoped, tag = 'scratch operand']
  %s0 = inlined_call_operand.vmem [shape: bf16[48,48], index: 0, kind: input, shape index: {}]
  %s1 = inlined_call_operand.vmem [shape: f32[48,2], index: 1, kind: input, shape index: {}]
  %s2 = inlined_call_operand.vmem [shape: s32[4,64], index: 2, kind: input, shape index: {}]
  %s3 = inlined_call_operand.vmem [shape: f32[4,1], index: 3, kind: input, shape index: {}]
  %s4 = inlined_call_operand.vmem [shape: bf16[48,64], index: 4, kind: input, shape index: {}]
  %s5 = inlined_call_operand.vmem [shape: bf16[256,64], index: 5, kind: input, shape index: {}]
  %s6 = inlined_call_operand.vmem [shape: bf16[288,128], index: 6, kind: input, shape index: {}]
  %s7 = inlined_call_operand.vmem [shape: f32[8,128], index: 7, kind: input, shape index: {}]
  %s8 = inlined_call_operand.vmem [shape: f32[4,128], index: 8, kind: output, shape index: {}]
  %s9 = sld [smem:[#allocation0]]
  $region42: #{sentence_localizer_forward.1} parent=0
    _
  %s11 = ssub.s32 1, %s9
  %s12 = scalar_select 0, %s11, %s9
  // Predicated region
  $region2: #{sentence_localizer_forward.1} parent=0 // pred_check
    _
  $region3: #{sentence_localizer_forward.1} parent=0 // pred_check_branch
    %14 = sbr.rel (0) target = $region5
  $region4: #{sentence_localizer_forward.1} parent=0 // pred_region
    _
  $region5: #{sentence_localizer_forward.1} parent=0 // pred_fallthru
    _
  // Predicated region
  $region6: #{sentence_localizer_forward.1} parent=0 // pred_check
    _
  $region7: #{sentence_localizer_forward.1} parent=0 // pred_check_branch
    %16 = sbr.rel (0) target = $region9
  $region8: #{sentence_localizer_forward.1} parent=0 // pred_region
    _
  $region9: #{sentence_localizer_forward.1} parent=0 // pred_fallthru
    _
  // Predicated region
  $region10: #{sentence_localizer_forward.1} parent=0 // pred_check
    _
  $region11: #{sentence_localizer_forward.1} parent=0 // pred_check_branch
    %18 = sbr.rel (0) target = $region13
  $region12: #{sentence_localizer_forward.1} parent=0 // pred_region
    _
  $region13: #{sentence_localizer_forward.1} parent=0 // pred_fallthru
    _
  // Predicated region
  $region14: #{sentence_localizer_forward.1} parent=0 // pred_check
    _
  $region15: #{sentence_localizer_forward.1} parent=0 // pred_check_branch
    %20 = sbr.rel (0) target = $region17
  $region16: #{sentence_localizer_forward.1} parent=0 // pred_region
    _
  $region17: #{sentence_localizer_forward.1} parent=0 // pred_fallthru
    _
  // Predicated region
  $region18: #{sentence_localizer_forward.1} parent=0 // pred_check
    _
  $region19: #{sentence_localizer_forward.1} parent=0 // pred_check_branch
    %22 = sbr.rel (0) target = $region21
  $region20: #{sentence_localizer_forward.1} parent=0 // pred_region
    _
  $region21: #{sentence_localizer_forward.1} parent=0 // pred_fallthru
    _
  // Predicated region
  $region22: #{sentence_localizer_forward.1} parent=0 // pred_check
    _
  $region23: #{sentence_localizer_forward.1} parent=0 // pred_check_branch
    %24 = sbr.rel (0) target = $region25
  $region24: #{sentence_localizer_forward.1} parent=0 // pred_region
    _
  $region25: #{sentence_localizer_forward.1} parent=0 // pred_fallthru
    _
  // Predicated region
  $region26: #{sentence_localizer_forward.1} parent=0 // pred_check
    _
  $region27: #{sentence_localizer_forward.1} parent=0 // pred_check_branch
    %26 = sbr.rel (0) target = $region29
  $region28: #{sentence_localizer_forward.1} parent=0 // pred_region
    _
  $region29: #{sentence_localizer_forward.1} parent=0 // pred_fallthru
    _
  // Predicated region
  $region30: #{sentence_localizer_forward.1} parent=0 // pred_check
    _
  $region31: #{sentence_localizer_forward.1} parent=0 // pred_check_branch
    %28 = sbr.rel (0) target = $region33
  $region32: #{sentence_localizer_forward.1} parent=0 // pred_region
    _
  $region33: #{sentence_localizer_forward.1} parent=0 // pred_fallthru
    _
  %v30 = vld [vmem:[%s7] sm:$0x1]
  %v31 = vld [vmem:[%s0] sm:$0xf]
  %v32 = vld [vmem:[%s0 + $0x4] sm:$0xf]
  %v33 = vld [vmem:[%s0 + $0x8] sm:$0xf]
  %v34 = vld [vmem:[%s0 + $0xc] sm:$0xf]
  %v35 = vld [vmem:[%s0 + $0x10] sm:$0xf]
  %v36 = vld [vmem:[%s0 + $0x14] sm:$0xf]
  %v37 = vld [vmem:[%s4] sm:$0xf]
  %v38 = vld [vmem:[%s4 + $0x4] sm:$0xf]
  %v39 = vld [vmem:[%s4 + $0x8] sm:$0xf]
  %v40 = vld [vmem:[%s4 + $0xc] sm:$0xf]
  %v41 = vld [vmem:[%s4 + $0x10] sm:$0xf]
  %v42 = vld [vmem:[%s4 + $0x14] sm:$0xf]
  %v43 = vlaneseq
  %v44 = vshrl.u32 %v43, 7
  %v45 = vsub.s32 0, %v44
  %v46 = vrot.slane %v30, %v45
  %v53 = vunpack.c.l.b16 %v31
  %v54 = vunpack.c.l.b16 %v32
  %v55 = vunpack.c.l.b16 %v33
  %v56 = vunpack.c.l.b16 %v34
  %v57 = vunpack.c.l.b16 %v35
  %v58 = vunpack.c.l.b16 %v36
  %v59 = vpack.c.b16 %v54, %v53
  %v60 = vpack.c.b16 %v56, %v55
  %v61 = vpack.c.b16 %v58, %v57
  %v68 = vunpack.c.l.b16 %v37
  %v69 = vunpack.c.l.b16 %v38
  %v70 = vunpack.c.l.b16 %v39
  %v71 = vunpack.c.l.b16 %v40
  %v72 = vunpack.c.l.b16 %v41
  %v73 = vunpack.c.l.b16 %v42
  %v74 = vpack.c.b16 %v69, %v68
  %v75 = vpack.c.b16 %v71, %v70
  %v76 = vpack.c.b16 %v73, %v72
  %vm80 = vcmask 392192
  %v82 = vsel %vm80, %v59, 0
  %v85 = vsel %vm80, %v60, 0
  %v88 = vsel %vm80, %v61, 0
  %90 = vmatprep.subr.bf16.mxu0 0
  %91 = vmatpush1.bf16.msra.mxu0 %v74
  %92 = vmatprep.subr.bf16.mxu0 0
  %93 = vmatpush1.bf16.msra.mxu0 %v75
  %94 = vmatprep.subr.bf16.mxu0 0
  %95 = vmatpush1.bf16.msra.mxu0 %v76
  %96 = vmatprep.subr.bf16.mxu0 0
  %97 = vmatpush1.bf16.msra.mxu0 0
  %98 = vmatprep.subr.bf16.mxu0 0
  %99 = vmatpush1.bf16.msra.mxu0 0
  %100 = vmatprep.subr.bf16.mxu0 0
  %101 = vmatpush1.bf16.msra.mxu0 0
  %102 = vmatprep.subr.bf16.mxu0 0
  %103 = vmatpush1.bf16.msra.mxu0 0
  %104 = vmatprep.subr.bf16.mxu0 0
  %105 = vmatpush1.bf16.msra.mxu0 0
  %106 = vmatprep.subr.bf16.mxu0 0
  %107 = vmatpush1.bf16.msra.mxu0 0
  %108 = vmatprep.subr.bf16.mxu0 0
  %109 = vmatpush1.bf16.msra.mxu0 0
  %110 = vmatprep.subr.bf16.mxu0 0
  %111 = vmatpush1.bf16.msra.mxu0 0
  %112 = vmatprep.subr.bf16.mxu0 0
  %113 = vmatpush1.bf16.msra.mxu0 0
  %114 = vmatprep.subr.bf16.mxu0 0
  %115 = vmatpush1.bf16.msra.mxu0 0
  %116 = vmatprep.subr.bf16.mxu0 0
  %117 = vmatpush1.bf16.msra.mxu0 0
  %118 = vmatprep.subr.bf16.mxu0 0
  %119 = vmatpush1.bf16.msra.mxu0 0
  %120 = vmatprep.subr.bf16.mxu0 0
  %121 = vmatpush1.bf16.msra.mxu0 0
  %122 = vmatprep.mubr.bf16.mxu0 0
  %123 = vmatmul.mubr.bf16.gmra.mrb[0].mxu0 %v82
  %v124 = vpop.f32.mrb[0].mxu0
  %v125 = vadd.f32 %v46, %v124
  %v126 = vpop.f32.mrb[0].mxu0
  %v127 = vpop.f32.mrb[0].mxu0
  %v128 = vadd.f32 %v46, %v127
  %v129 = vpop.f32.mrb[0].mxu0
  %130 = vmatprep.mubr.bf16.mxu0 0
  %131 = vmatmul.mubr.bf16.gmra.mrb[0].mxu0 %v85
  %v132 = vpop.f32.mrb[0].mxu0
  %v133 = vadd.f32 %v46, %v132
  %v134 = vpop.f32.mrb[0].mxu0
  %v135 = vpop.f32.mrb[0].mxu0
  %v136 = vadd.f32 %v46, %v135
  %v137 = vpop.f32.mrb[0].mxu0
  %138 = vmatprep.mubr.bf16.mxu0 0
  %139 = vmatmul.mubr.bf16.gmra.mrb[0].mxu0 %v88
  %v140 = vpop.f32.mrb[0].mxu0
  %v141 = vadd.f32 %v46, %v140
  %v142 = vpop.f32.mrb[0].mxu0
  %v143 = vpop.f32.mrb[0].mxu0
  %v144 = vadd.f32 %v46, %v143
  %v145 = vpop.f32.mrb[0].mxu0
  %146 = vdwg.mxu0
  %v147 = vld [vmem:[%s5] sm:$0xf]
  %v148 = vld [vmem:[%s5 + $0x4] sm:$0xf]
  %v149 = vld [vmem:[%s5 + $0x8] sm:$0xf]
  %v150 = vld [vmem:[%s5 + $0xc] sm:$0xf]
  %v151 = vld [vmem:[%s5 + $0x10] sm:$0xf]
  %v152 = vld [vmem:[%s5 + $0x14] sm:$0xf]
  %v153 = vld [vmem:[%s5 + $0x18] sm:$0xf]
  %v154 = vld [vmem:[%s5 + $0x1c] sm:$0xf]
  %v155 = vld [vmem:[%s2] sm:$0xf]
  %v164 = vunpack.c.l.b16 %v147
  %v165 = vunpack.c.l.b16 %v148
  %v166 = vunpack.c.l.b16 %v149
  %v167 = vunpack.c.l.b16 %v150
  %v168 = vunpack.c.l.b16 %v151
  %v169 = vunpack.c.l.b16 %v152
  %v170 = vunpack.c.l.b16 %v153
  %v171 = vunpack.c.l.b16 %v154
  %v172 = vpack.c.b16 %v165, %v164
  %v173 = vpack.c.b16 %v167, %v166
  %v174 = vpack.c.b16 %v169, %v168
  %v175 = vpack.c.b16 %v171, %v170
  %vm180 = vcmask 523264
  %v182 = vsel %vm180, 0, 0
  %184 = vmatprep.subr.bf16.mxu0 0
  %185 = vmatpush1.bf16.msra.mxu0 %v172
  %186 = vmatprep.subr.bf16.mxu0 0
  %187 = vmatpush1.bf16.msra.mxu0 %v173
  %188 = vmatprep.subr.bf16.mxu0 0
  %189 = vmatpush1.bf16.msra.mxu0 %v174
  %190 = vmatprep.subr.bf16.mxu0 0
  %191 = vmatpush1.bf16.msra.mxu0 %v175
  %192 = vmatprep.subr.bf16.mxu0 0
  %193 = vmatpush1.bf16.msra.mxu0 0
  %194 = vmatprep.subr.bf16.mxu0 0
  %195 = vmatpush1.bf16.msra.mxu0 0
  %196 = vmatprep.subr.bf16.mxu0 0
  %197 = vmatpush1.bf16.msra.mxu0 0
  %198 = vmatprep.subr.bf16.mxu0 0
  %199 = vmatpush1.bf16.msra.mxu0 0
  %200 = vmatprep.subr.bf16.mxu0 0
  %201 = vmatpush1.bf16.msra.mxu0 0
  %202 = vmatprep.subr.bf16.mxu0 0
  %203 = vmatpush1.bf16.msra.mxu0 0
  %204 = vmatprep.subr.bf16.mxu0 0
  %205 = vmatpush1.bf16.msra.mxu0 0
  %206 = vmatprep.subr.bf16.mxu0 0
  %207 = vmatpush1.bf16.msra.mxu0 0
  %208 = vmatprep.subr.bf16.mxu0 0
  %209 = vmatpush1.bf16.msra.mxu0 0
  %210 = vmatprep.subr.bf16.mxu0 0
  %211 = vmatpush1.bf16.msra.mxu0 0
  %212 = vmatprep.subr.bf16.mxu0 0
  %213 = vmatpush1.bf16.msra.mxu0 0
  %214 = vmatprep.subr.bf16.mxu0 0
  %215 = vmatpush1.bf16.msra.mxu0 0
  %216 = vmatprep.mubr.bf16.mxu0 0
  %217 = vmatmul.mubr.bf16.gmra.mrb[0].mxu0 %v182
  %v218 = vpop.f32.mrb[0].mxu0
  %v219 = vadd.f32 0.0, %v218
  %v220 = vpop.f32.mrb[0].mxu0
  %v221 = vpop.f32.mrb[0].mxu0
  %v222 = vpop.f32.mrb[0].mxu0
  %223 = vdwg.mxu0
  %v224 = vadd.f32 %v125, %v219
  %v225 = vtanh.pop %v224
  %vm226 = vcmask 519168
  %227 = vst.msk [vmem:[#allocation2] sm:$0xf] %vm226, %v225
  %vm228 = vcmp.eq.s32.totalorder %v155, 1
  %v229 = vsel %vm228, %v225, 0.0
  %v230 = vpack.c.bf16 %v225, %v225
  %v232 = vsel %vm180, %v230, 0
  %234 = vmatprep.subr.bf16.mxu0 0
  %235 = vmatpush1.bf16.msra.mxu0 %v172
  %236 = vmatprep.subr.bf16.mxu0 0
  %237 = vmatpush1.bf16.msra.mxu0 %v173
  %238 = vmatprep.subr.bf16.mxu0 0
  %239 = vmatpush1.bf16.msra.mxu0 %v174
  %240 = vmatprep.subr.bf16.mxu0 0
  %241 = vmatpush1.bf16.msra.mxu0 %v175
  %242 = vmatprep.subr.bf16.mxu0 0
  %243 = vmatpush1.bf16.msra.mxu0 0
  %244 = vmatprep.subr.bf16.mxu0 0
  %245 = vmatpush1.bf16.msra.mxu0 0
  %246 = vmatprep.subr.bf16.mxu0 0
  %247 = vmatpush1.bf16.msra.mxu0 0
  %248 = vmatprep.subr.bf16.mxu0 0
  %249 = vmatpush1.bf16.msra.mxu0 0
  %250 = vmatprep.subr.bf16.mxu0 0
  %251 = vmatpush1.bf16.msra.mxu0 0
  %252 = vmatprep.subr.bf16.mxu0 0
  %253 = vmatpush1.bf16.msra.mxu0 0
  %254 = vmatprep.subr.bf16.mxu0 0
  %255 = vmatpush1.bf16.msra.mxu0 0
  %256 = vmatprep.subr.bf16.mxu0 0
  %257 = vmatpush1.bf16.msra.mxu0 0
  %258 = vmatprep.subr.bf16.mxu0 0
  %259 = vmatpush1.bf16.msra.mxu0 0
  %260 = vmatprep.subr.bf16.mxu0 0
  %261 = vmatpush1.bf16.msra.mxu0 0
  %262 = vmatprep.subr.bf16.mxu0 0
  %263 = vmatpush1.bf16.msra.mxu0 0
  %264 = vmatprep.subr.bf16.mxu0 0
  %265 = vmatpush1.bf16.msra.mxu0 0
  %266 = vmatprep.mubr.bf16.mxu0 0
  %267 = vmatmul.mubr.bf16.gmra.mrb[0].mxu0 %v232
  %v268 = vpop.f32.mrb[0].mxu0
  %v269 = vadd.f32 0.0, %v268
  %v270 = vpop.f32.mrb[0].mxu0
  %v271 = vpop.f32.mrb[0].mxu0
  %v272 = vpop.f32.mrb[0].mxu0
  %273 = vdwg.mxu0
  %v275 = vrot.slane %v269, 4
  %v277 = vadd.f32 %v125, %v275
  %v278 = vtanh.pop %v277
  %vm279 = vcmask 523268
  %280 = vst.msk [vmem:[#allocation2] sm:$0xf0] %vm279, %v278
  %vm281 = vcmp.eq.s32.totalorder %v155, 2
  %v283 = vrot.slane %v278, 4
  %v285 = vsel %vm281, %v283, %v229
  %v286 = vpack.c.bf16 %v278, %v278
  %v288 = vrot.slane %v286, 2
  %v290 = vsel %vm180, %v288, 0
  %292 = vmatprep.subr.bf16.mxu0 0
  %293 = vmatpush1.bf16.msra.mxu0 %v172
  %294 = vmatprep.subr.bf16.mxu0 0
  %295 = vmatpush1.bf16.msra.mxu0 %v173
  %296 = vmatprep.subr.bf16.mxu0 0
  %297 = vmatpush1.bf16.msra.mxu0 %v174
  %298 = vmatprep.subr.bf16.mxu0 0
  %299 = vmatpush1.bf16.msra.mxu0 %v175
  %300 = vmatprep.subr.bf16.mxu0 0
  %301 = vmatpush1.bf16.msra.mxu0 0
  %302 = vmatprep.subr.bf16.mxu0 0
  %303 = vmatpush1.bf16.msra.mxu0 0
  %304 = vmatprep.subr.bf16.mxu0 0
  %305 = vmatpush1.bf16.msra.mxu0 0
  %306 = vmatprep.subr.bf16.mxu0 0
  %307 = vmatpush1.bf16.msra.mxu0 0
  %308 = vmatprep.subr.bf16.mxu0 0
  %309 = vmatpush1.bf16.msra.mxu0 0
  %310 = vmatprep.subr.bf16.mxu0 0
  %311 = vmatpush1.bf16.msra.mxu0 0
  %312 = vmatprep.subr.bf16.mxu0 0
  %313 = vmatpush1.bf16.msra.mxu0 0
  %314 = vmatprep.subr.bf16.mxu0 0
  %315 = vmatpush1.bf16.msra.mxu0 0
  %316 = vmatprep.subr.bf16.mxu0 0
  %317 = vmatpush1.bf16.msra.mxu0 0
  %318 = vmatprep.subr.bf16.mxu0 0
  %319 = vmatpush1.bf16.msra.mxu0 0
  %320 = vmatprep.subr.bf16.mxu0 0
  %321 = vmatpush1.bf16.msra.mxu0 0
  %322 = vmatprep.subr.bf16.mxu0 0
  %323 = vmatpush1.bf16.msra.mxu0 0
  %324 = vmatprep.mubr.bf16.mxu0 0
  %325 = vmatmul.mubr.bf16.gmra.mrb[0].mxu0 %v290
  %v326 = vpop.f32.mrb[0].mxu0
  %v327 = vadd.f32 0.0, %v326
  %v328 = vpop.f32.mrb[0].mxu0
  %v329 = vpop.f32.mrb[0].mxu0
  %v330 = vpop.f32.mrb[0].mxu0
  %331 = vdwg.mxu0
  %v332 = vadd.f32 %v128, %v327
  %v333 = vtanh.pop %v332
  %334 = vst.msk [vmem:[#allocation2 + $0x8] sm:$0xf] %vm226, %v333
  %vm335 = vcmp.eq.s32.totalorder %v155, 3
  %v336 = vsel %vm335, %v333, %v285
  %v337 = vpack.c.bf16 %v333, %v333
  %v339 = vsel %vm180, %v337, 0
  %341 = vmatprep.subr.bf16.mxu0 0
  %342 = vmatpush1.bf16.msra.mxu0 %v172
  %343 = vmatprep.subr.bf16.mxu0 0
  %344 = vmatpush1.bf16.msra.mxu0 %v173
  %345 = vmatprep.subr.bf16.mxu0 0
  %346 = vmatpush1.bf16.msra.mxu0 %v174
  %347 = vmatprep.subr.bf16.mxu0 0
  %348 = vmatpush1.bf16.msra.mxu0 %v175
  %349 = vmatprep.subr.bf16.mxu0 0
  %350 = vmatpush1.bf16.msra.mxu0 0
  %351 = vmatprep.subr.bf16.mxu0 0
  %352 = vmatpush1.bf16.msra.mxu0 0
  %353 = vmatprep.subr.bf16.mxu0 0
  %354 = vmatpush1.bf16.msra.mxu0 0
  %355 = vmatprep.subr.bf16.mxu0 0
  %356 = vmatpush1.bf16.msra.mxu0 0
  %357 = vmatprep.subr.bf16.mxu0 0
  %358 = vmatpush1.bf16.msra.mxu0 0
  %359 = vmatprep.subr.bf16.mxu0 0
  %360 = vmatpush1.bf16.msra.mxu0 0
  %361 = vmatprep.subr.bf16.mxu0 0
  %362 = vmatpush1.bf16.msra.mxu0 0
  %363 = vmatprep.subr.bf16.mxu0 0
  %364 = vmatpush1.bf16.msra.mxu0 0
  %365 = vmatprep.subr.bf16.mxu0 0
  %366 = vmatpush1.bf16.msra.mxu0 0
  %367 = vmatprep.subr.bf16.mxu0 0
  %368 = vmatpush1.bf16.msra.mxu0 0
  %369 = vmatprep.subr.bf16.mxu0 0
  %370 = vmatpush1.bf16.msra.mxu0 0
  %371 = vmatprep.subr.bf16.mxu0 0
  %372 = vmatpush1.bf16.msra.mxu0 0
  %373 = vmatprep.mubr.bf16.mxu0 0
  %374 = vmatmul.mubr.bf16.gmra.mrb[0].mxu0 %v339
  %v375 = vpop.f32.mrb[0].mxu0
  %v376 = vadd.f32 0.0, %v375
  %v377 = vpop.f32.mrb[0].mxu0
  %v378 = vpop.f32.mrb[0].mxu0
  %v379 = vpop.f32.mrb[0].mxu0
  %380 = vdwg.mxu0
  %v382 = vrot.slane %v376, 4
  %v384 = vadd.f32 %v128, %v382
  %v385 = vtanh.pop %v384
  %386 = vst.msk [vmem:[#allocation2 + $0x8] sm:$0xf0] %vm279, %v385
  %vm387 = vcmp.eq.s32.totalorder %v155, 4
  %v389 = vrot.slane %v385, 4
  %v391 = vsel %vm387, %v389, %v336
  %v392 = vpack.c.bf16 %v385, %v385
  %v394 = vrot.slane %v392, 2
  %v396 = vsel %vm180, %v394, 0
  %398 = vmatprep.subr.bf16.mxu0 0
  %399 = vmatpush1.bf16.msra.mxu0 %v172
  %400 = vmatprep.subr.bf16.mxu0 0
  %401 = vmatpush1.bf16.msra.mxu0 %v173
  %402 = vmatprep.subr.bf16.mxu0 0
  %403 = vmatpush1.bf16.msra.mxu0 %v174
  %404 = vmatprep.subr.bf16.mxu0 0
  %405 = vmatpush1.bf16.msra.mxu0 %v175
  %406 = vmatprep.subr.bf16.mxu0 0
  %407 = vmatpush1.bf16.msra.mxu0 0
  %408 = vmatprep.subr.bf16.mxu0 0
  %409 = vmatpush1.bf16.msra.mxu0 0
  %410 = vmatprep.subr.bf16.mxu0 0
  %411 = vmatpush1.bf16.msra.mxu0 0
  %412 = vmatprep.subr.bf16.mxu0 0
  %413 = vmatpush1.bf16.msra.mxu0 0
  %414 = vmatprep.subr.bf16.mxu0 0
  %415 = vmatpush1.bf16.msra.mxu0 0
  %416 = vmatprep.subr.bf16.mxu0 0
  %417 = vmatpush1.bf16.msra.mxu0 0
  %418 = vmatprep.subr.bf16.mxu0 0
  %419 = vmatpush1.bf16.msra.mxu0 0
  %420 = vmatprep.subr.bf16.mxu0 0
  %421 = vmatpush1.bf16.msra.mxu0 0
  %422 = vmatprep.subr.bf16.mxu0 0
  %423 = vmatpush1.bf16.msra.mxu0 0
  %424 = vmatprep.subr.bf16.mxu0 0
  %425 = vmatpush1.bf16.msra.mxu0 0
  %426 = vmatprep.subr.bf16.mxu0 0
  %427 = vmatpush1.bf16.msra.mxu0 0
  %428 = vmatprep.subr.bf16.mxu0 0
  %429 = vmatpush1.bf16.msra.mxu0 0
  %430 = vmatprep.mubr.bf16.mxu0 0
  %431 = vmatmul.mubr.bf16.gmra.mrb[0].mxu0 %v396
  %v432 = vpop.f32.mrb[0].mxu0
  %v433 = vadd.f32 0.0, %v432
  %v434 = vpop.f32.mrb[0].mxu0
  %v435 = vpop.f32.mrb[0].mxu0
  %v436 = vpop.f32.mrb[0].mxu0
  %437 = vdwg.mxu0
  %v438 = vadd.f32 %v133, %v433
  %v439 = vtanh.pop %v438
  %440 = vst.msk [vmem:[#allocation2 + $0x10] sm:$0xf] %vm226, %v439
  %vm441 = vcmp.eq.s32.totalorder %v155, 5
  %v442 = vsel %vm441, %v439, %v391
  %v443 = vpack.c.bf16 %v439, %v439
  %v445 = vsel %vm180, %v443, 0
  %447 = vmatprep.subr.bf16.mxu0 0
  %448 = vmatpush1.bf16.msra.mxu0 %v172
  %449 = vmatprep.subr.bf16.mxu0 0
  %450 = vmatpush1.bf16.msra.mxu0 %v173
  %451 = vmatprep.subr.bf16.mxu0 0
  %452 = vmatpush1.bf16.msra.mxu0 %v174
  %453 = vmatprep.subr.bf16.mxu0 0
  %454 = vmatpush1.bf16.msra.mxu0 %v175
  %455 = vmatprep.subr.bf16.mxu0 0
  %456 = vmatpush1.bf16.msra.mxu0 0
  %457 = vmatprep.subr.bf16.mxu0 0
  %458 = vmatpush1.bf16.msra.mxu0 0
  %459 = vmatprep.subr.bf16.mxu0 0
  %460 = vmatpush1.bf16.msra.mxu0 0
  %461 = vmatprep.subr.bf16.mxu0 0
  %462 = vmatpush1.bf16.msra.mxu0 0
  %463 = vmatprep.subr.bf16.mxu0 0
  %464 = vmatpush1.bf16.msra.mxu0 0
  %465 = vmatprep.subr.bf16.mxu0 0
  %466 = vmatpush1.bf16.msra.mxu0 0
  %467 = vmatprep.subr.bf16.mxu0 0
  %468 = vmatpush1.bf16.msra.mxu0 0
  %469 = vmatprep.subr.bf16.mxu0 0
  %470 = vmatpush1.bf16.msra.mxu0 0
  %471 = vmatprep.subr.bf16.mxu0 0
  %472 = vmatpush1.bf16.msra.mxu0 0
  %473 = vmatprep.subr.bf16.mxu0 0
  %474 = vmatpush1.bf16.msra.mxu0 0
  %475 = vmatprep.subr.bf16.mxu0 0
  %476 = vmatpush1.bf16.msra.mxu0 0
  %477 = vmatprep.subr.bf16.mxu0 0
  %478 = vmatpush1.bf16.msra.mxu0 0
  %479 = vmatprep.mubr.bf16.mxu0 0
  %480 = vmatmul.mubr.bf16.gmra.mrb[0].mxu0 %v445
  %v481 = vpop.f32.mrb[0].mxu0
  %v482 = vadd.f32 0.0, %v481
  %v483 = vpop.f32.mrb[0].mxu0
  %v484 = vpop.f32.mrb[0].mxu0
  %v485 = vpop.f32.mrb[0].mxu0
  %486 = vdwg.mxu0
  %v488 = vrot.slane %v482, 4
  %v490 = vadd.f32 %v133, %v488
  %v491 = vtanh.pop %v490
  %492 = vst.msk [vmem:[#allocation2 + $0x10] sm:$0xf0] %vm279, %v491
  %vm493 = vcmp.eq.s32.totalorder %v155, 6
  %v495 = vrot.slane %v491, 4
  %v497 = vsel %vm493, %v495, %v442
  %v498 = vpack.c.bf16 %v491, %v491
  %v500 = vrot.slane %v498, 2
  %v502 = vsel %vm180, %v500, 0
  %504 = vmatprep.subr.bf16.mxu0 0
  %505 = vmatpush1.bf16.msra.mxu0 %v172
  %506 = vmatprep.subr.bf16.mxu0 0
  %507 = vmatpush1.bf16.msra.mxu0 %v173
  %508 = vmatprep.subr.bf16.mxu0 0
  %509 = vmatpush1.bf16.msra.mxu0 %v174
  %510 = vmatprep.subr.bf16.mxu0 0
  %511 = vmatpush1.bf16.msra.mxu0 %v175
  %512 = vmatprep.subr.bf16.mxu0 0
  %513 = vmatpush1.bf16.msra.mxu0 0
  %514 = vmatprep.subr.bf16.mxu0 0
  %515 = vmatpush1.bf16.msra.mxu0 0
  %516 = vmatprep.subr.bf16.mxu0 0
  %517 = vmatpush1.bf16.msra.mxu0 0
  %518 = vmatprep.subr.bf16.mxu0 0
  %519 = vmatpush1.bf16.msra.mxu0 0
  %520 = vmatprep.subr.bf16.mxu0 0
  %521 = vmatpush1.bf16.msra.mxu0 0
  %522 = vmatprep.subr.bf16.mxu0 0
  %523 = vmatpush1.bf16.msra.mxu0 0
  %524 = vmatprep.subr.bf16.mxu0 0
  %525 = vmatpush1.bf16.msra.mxu0 0
  %526 = vmatprep.subr.bf16.mxu0 0
  %527 = vmatpush1.bf16.msra.mxu0 0
  %528 = vmatprep.subr.bf16.mxu0 0
  %529 = vmatpush1.bf16.msra.mxu0 0
  %530 = vmatprep.subr.bf16.mxu0 0
  %531 = vmatpush1.bf16.msra.mxu0 0
  %532 = vmatprep.subr.bf16.mxu0 0
  %533 = vmatpush1.bf16.msra.mxu0 0
  %534 = vmatprep.subr.bf16.mxu0 0
  %535 = vmatpush1.bf16.msra.mxu0 0
  %536 = vmatprep.mubr.bf16.mxu0 0
  %537 = vmatmul.mubr.bf16.gmra.mrb[0].mxu0 %v502
  %v538 = vpop.f32.mrb[0].mxu0
  %v539 = vadd.f32 0.0, %v538
  %v540 = vpop.f32.mrb[0].mxu0
  %v541 = vpop.f32.mrb[0].mxu0
  %v542 = vpop.f32.mrb[0].mxu0
  %543 = vdwg.mxu0
  %v544 = vadd.f32 %v136, %v539
  %v545 = vtanh.pop %v544
  %546 = vst.msk [vmem:[#allocation2 + $0x18] sm:$0xf] %vm226, %v545
  %vm547 = vcmp.eq.s32.totalorder %v155, 7
  %v548 = vsel %vm547, %v545, %v497
  %v549 = vpack.c.bf16 %v545, %v545
  %v551 = vsel %vm180, %v549, 0
  %553 = vmatprep.subr.bf16.mxu0 0
  %554 = vmatpush1.bf16.msra.mxu0 %v172
  %555 = vmatprep.subr.bf16.mxu0 0
  %556 = vmatpush1.bf16.msra.mxu0 %v173
  %557 = vmatprep.subr.bf16.mxu0 0
  %558 = vmatpush1.bf16.msra.mxu0 %v174
  %559 = vmatprep.subr.bf16.mxu0 0
  %560 = vmatpush1.bf16.msra.mxu0 %v175
  %561 = vmatprep.subr.bf16.mxu0 0
  %562 = vmatpush1.bf16.msra.mxu0 0
  %563 = vmatprep.subr.bf16.mxu0 0
  %564 = vmatpush1.bf16.msra.mxu0 0
  %565 = vmatprep.subr.bf16.mxu0 0
  %566 = vmatpush1.bf16.msra.mxu0 0
  %567 = vmatprep.subr.bf16.mxu0 0
  %568 = vmatpush1.bf16.msra.mxu0 0
  %569 = vmatprep.subr.bf16.mxu0 0
  %570 = vmatpush1.bf16.msra.mxu0 0
  %571 = vmatprep.subr.bf16.mxu0 0
  %572 = vmatpush1.bf16.msra.mxu0 0
  %573 = vmatprep.subr.bf16.mxu0 0
  %574 = vmatpush1.bf16.msra.mxu0 0
  %575 = vmatprep.subr.bf16.mxu0 0
  %576 = vmatpush1.bf16.msra.mxu0 0
  %577 = vmatprep.subr.bf16.mxu0 0
  %578 = vmatpush1.bf16.msra.mxu0 0
  %579 = vmatprep.subr.bf16.mxu0 0
  %580 = vmatpush1.bf16.msra.mxu0 0
  %581 = vmatprep.subr.bf16.mxu0 0
  %582 = vmatpush1.bf16.msra.mxu0 0
  %583 = vmatprep.subr.bf16.mxu0 0
  %584 = vmatpush1.bf16.msra.mxu0 0
  %585 = vmatprep.mubr.bf16.mxu0 0
  %586 = vmatmul.mubr.bf16.gmra.mrb[0].mxu0 %v551
  %v587 = vpop.f32.mrb[0].mxu0
  %v588 = vadd.f32 0.0, %v587
  %v589 = vpop.f32.mrb[0].mxu0
  %v590 = vpop.f32.mrb[0].mxu0
  %v591 = vpop.f32.mrb[0].mxu0
  %592 = vdwg.mxu0
  %v594 = vrot.slane %v588, 4
  %v596 = vadd.f32 %v136, %v594
  %v597 = vtanh.pop %v596
  %598 = vst.msk [vmem:[#allocation2 + $0x18] sm:$0xf0] %vm279, %v597
  %vm599 = vcmp.eq.s32.totalorder %v155, 8
  %v601 = vrot.slane %v597, 4
  %v603 = vsel %vm599, %v601, %v548
  %v604 = vpack.c.bf16 %v597, %v597
  %v606 = vrot.slane %v604, 2
  %v608 = vsel %vm180, %v606, 0
  %610 = vmatprep.subr.bf16.mxu0 0
  %611 = vmatpush1.bf16.msra.mxu0 %v172
  %612 = vmatprep.subr.bf16.mxu0 0
  %613 = vmatpush1.bf16.msra.mxu0 %v173
  %614 = vmatprep.subr.bf16.mxu0 0
  %615 = vmatpush1.bf16.msra.mxu0 %v174
  %616 = vmatprep.subr.bf16.mxu0 0
  %617 = vmatpush1.bf16.msra.mxu0 %v175
  %618 = vmatprep.subr.bf16.mxu0 0
  %619 = vmatpush1.bf16.msra.mxu0 0
  %620 = vmatprep.subr.bf16.mxu0 0
  %621 = vmatpush1.bf16.msra.mxu0 0
  %622 = vmatprep.subr.bf16.mxu0 0
  %623 = vmatpush1.bf16.msra.mxu0 0
  %624 = vmatprep.subr.bf16.mxu0 0
  %625 = vmatpush1.bf16.msra.mxu0 0
  %626 = vmatprep.subr.bf16.mxu0 0
  %627 = vmatpush1.bf16.msra.mxu0 0
  %628 = vmatprep.subr.bf16.mxu0 0
  %629 = vmatpush1.bf16.msra.mxu0 0
  %630 = vmatprep.subr.bf16.mxu0 0
  %631 = vmatpush1.bf16.msra.mxu0 0
  %632 = vmatprep.subr.bf16.mxu0 0
  %633 = vmatpush1.bf16.msra.mxu0 0
  %634 = vmatprep.subr.bf16.mxu0 0
  %635 = vmatpush1.bf16.msra.mxu0 0
  %636 = vmatprep.subr.bf16.mxu0 0
  %637 = vmatpush1.bf16.msra.mxu0 0
  %638 = vmatprep.subr.bf16.mxu0 0
  %639 = vmatpush1.bf16.msra.mxu0 0
  %640 = vmatprep.subr.bf16.mxu0 0
  %641 = vmatpush1.bf16.msra.mxu0 0
  %642 = vmatprep.mubr.bf16.mxu0 0
  %643 = vmatmul.mubr.bf16.gmra.mrb[0].mxu0 %v608
  %v644 = vpop.f32.mrb[0].mxu0
  %v645 = vadd.f32 0.0, %v644
  %v646 = vpop.f32.mrb[0].mxu0
  %v647 = vpop.f32.mrb[0].mxu0
  %v648 = vpop.f32.mrb[0].mxu0
  %649 = vdwg.mxu0
  %v650 = vadd.f32 %v141, %v645
  %v651 = vtanh.pop %v650
  %652 = vst.msk [vmem:[#allocation2 + $0x20] sm:$0xf] %vm226, %v651
  %vm653 = vcmp.eq.s32.totalorder %v155, 9
  %v654 = vsel %vm653, %v651, %v603
  %v655 = vpack.c.bf16 %v651, %v651
  %v657 = vsel %vm180, %v655, 0
  %659 = vmatprep.subr.bf16.mxu0 0
  %660 = vmatpush1.bf16.msra.mxu0 %v172
  %661 = vmatprep.subr.bf16.mxu0 0
  %662 = vmatpush1.bf16.msra.mxu0 %v173
  %663 = vmatprep.subr.bf16.mxu0 0
  %664 = vmatpush1.bf16.msra.mxu0 %v174
  %665 = vmatprep.subr.bf16.mxu0 0
  %666 = vmatpush1.bf16.msra.mxu0 %v175
  %667 = vmatprep.subr.bf16.mxu0 0
  %668 = vmatpush1.bf16.msra.mxu0 0
  %669 = vmatprep.subr.bf16.mxu0 0
  %670 = vmatpush1.bf16.msra.mxu0 0
  %671 = vmatprep.subr.bf16.mxu0 0
  %672 = vmatpush1.bf16.msra.mxu0 0
  %673 = vmatprep.subr.bf16.mxu0 0
  %674 = vmatpush1.bf16.msra.mxu0 0
  %675 = vmatprep.subr.bf16.mxu0 0
  %676 = vmatpush1.bf16.msra.mxu0 0
  %677 = vmatprep.subr.bf16.mxu0 0
  %678 = vmatpush1.bf16.msra.mxu0 0
  %679 = vmatprep.subr.bf16.mxu0 0
  %680 = vmatpush1.bf16.msra.mxu0 0
  %681 = vmatprep.subr.bf16.mxu0 0
  %682 = vmatpush1.bf16.msra.mxu0 0
  %683 = vmatprep.subr.bf16.mxu0 0
  %684 = vmatpush1.bf16.msra.mxu0 0
  %685 = vmatprep.subr.bf16.mxu0 0
  %686 = vmatpush1.bf16.msra.mxu0 0
  %687 = vmatprep.subr.bf16.mxu0 0
  %688 = vmatpush1.bf16.msra.mxu0 0
  %689 = vmatprep.subr.bf16.mxu0 0
  %690 = vmatpush1.bf16.msra.mxu0 0
  %691 = vmatprep.mubr.bf16.mxu0 0
  %692 = vmatmul.mubr.bf16.gmra.mrb[0].mxu0 %v657
  %v693 = vpop.f32.mrb[0].mxu0
  %v694 = vadd.f32 0.0, %v693
  %v695 = vpop.f32.mrb[0].mxu0
  %v696 = vpop.f32.mrb[0].mxu0
  %v697 = vpop.f32.mrb[0].mxu0
  %698 = vdwg.mxu0
  %v700 = vrot.slane %v694, 4
  %v702 = vadd.f32 %v141, %v700
  %v703 = vtanh.pop %v702
  %704 = vst.msk [vmem:[#allocation2 + $0x20] sm:$0xf0] %vm279, %v703
  %vm705 = vcmp.eq.s32.totalorder %v155, 10
  %v707 = vrot.slane %v703, 4
  %v709 = vsel %vm705, %v707, %v654
  %v710 = vpack.c.bf16 %v703, %v703
  %v712 = vrot.slane %v710, 2
  %v714 = vsel %vm180, %v712, 0
  %716 = vmatprep.subr.bf16.mxu0 0
  %717 = vmatpush1.bf16.msra.mxu0 %v172
  %718 = vmatprep.subr.bf16.mxu0 0
  %719 = vmatpush1.bf16.msra.mxu0 %v173
  %720 = vmatprep.subr.bf16.mxu0 0
  %721 = vmatpush1.bf16.msra.mxu0 %v174
  %722 = vmatprep.subr.bf16.mxu0 0
  %723 = vmatpush1.bf16.msra.mxu0 %v175
  %724 = vmatprep.subr.bf16.mxu0 0
  %725 = vmatpush1.bf16.msra.mxu0 0
  %726 = vmatprep.subr.bf16.mxu0 0
  %727 = vmatpush1.bf16.msra.mxu0 0
  %728 = vmatprep.subr.bf16.mxu0 0
  %729 = vmatpush1.bf16.msra.mxu0 0
  %730 = vmatprep.subr.bf16.mxu0 0
  %731 = vmatpush1.bf16.msra.mxu0 0
  %732 = vmatprep.subr.bf16.mxu0 0
  %733 = vmatpush1.bf16.msra.mxu0 0
  %734 = vmatprep.subr.bf16.mxu0 0
  %735 = vmatpush1.bf16.msra.mxu0 0
  %736 = vmatprep.subr.bf16.mxu0 0
  %737 = vmatpush1.bf16.msra.mxu0 0
  %738 = vmatprep.subr.bf16.mxu0 0
  %739 = vmatpush1.bf16.msra.mxu0 0
  %740 = vmatprep.subr.bf16.mxu0 0
  %741 = vmatpush1.bf16.msra.mxu0 0
  %742 = vmatprep.subr.bf16.mxu0 0
  %743 = vmatpush1.bf16.msra.mxu0 0
  %744 = vmatprep.subr.bf16.mxu0 0
  %745 = vmatpush1.bf16.msra.mxu0 0
  %746 = vmatprep.subr.bf16.mxu0 0
  %747 = vmatpush1.bf16.msra.mxu0 0
  %748 = vmatprep.mubr.bf16.mxu0 0
  %749 = vmatmul.mubr.bf16.gmra.mrb[0].mxu0 %v714
  %v750 = vpop.f32.mrb[0].mxu0
  %v751 = vadd.f32 0.0, %v750
  %v752 = vpop.f32.mrb[0].mxu0
  %v753 = vpop.f32.mrb[0].mxu0
  %v754 = vpop.f32.mrb[0].mxu0
  %755 = vdwg.mxu0
  %v756 = vadd.f32 %v144, %v751
  %v757 = vtanh.pop %v756
  %758 = vst.msk [vmem:[#allocation2 + $0x28] sm:$0xf] %vm226, %v757
  %vm759 = vcmp.eq.s32.totalorder %v155, 11
  %v760 = vsel %vm759, %v757, %v709
  %v761 = vpack.c.bf16 %v757, %v757
  %v763 = vsel %vm180, %v761, 0
  %765 = vmatprep.subr.bf16.mxu0 0
  %766 = vmatpush1.bf16.msra.mxu0 %v172
  %767 = vmatprep.subr.bf16.mxu0 0
  %768 = vmatpush1.bf16.msra.mxu0 %v173
  %769 = vmatprep.subr.bf16.mxu0 0
  %770 = vmatpush1.bf16.msra.mxu0 %v174
  %771 = vmatprep.subr.bf16.mxu0 0
  %772 = vmatpush1.bf16.msra.mxu0 %v175
  %773 = vmatprep.subr.bf16.mxu0 0
  %774 = vmatpush1.bf16.msra.mxu0 0
  %775 = vmatprep.subr.bf16.mxu0 0
  %776 = vmatpush1.bf16.msra.mxu0 0
  %777 = vmatprep.subr.bf16.mxu0 0
  %778 = vmatpush1.bf16.msra.mxu0 0
  %779 = vmatprep.subr.bf16.mxu0 0
  %780 = vmatpush1.bf16.msra.mxu0 0
  %781 = vmatprep.subr.bf16.mxu0 0
  %782 = vmatpush1.bf16.msra.mxu0 0
  %783 = vmatprep.subr.bf16.mxu0 0
  %784 = vmatpush1.bf16.msra.mxu0 0
  %785 = vmatprep.subr.bf16.mxu0 0
  %786 = vmatpush1.bf16.msra.mxu0 0
  %787 = vmatprep.subr.bf16.mxu0 0
  %788 = vmatpush1.bf16.msra.mxu0 0
  %789 = vmatprep.subr.bf16.mxu0 0
  %790 = vmatpush1.bf16.msra.mxu0 0
  %791 = vmatprep.subr.bf16.mxu0 0
  %792 = vmatpush1.bf16.msra.mxu0 0
  %793 = vmatprep.subr.bf16.mxu0 0
  %794 = vmatpush1.bf16.msra.mxu0 0
  %795 = vmatprep.subr.bf16.mxu0 0
  %796 = vmatpush1.bf16.msra.mxu0 0
  %797 = vmatprep.mubr.bf16.mxu0 0
  %798 = vmatmul.mubr.bf16.gmra.mrb[0].mxu0 %v763
  %v799 = vpop.f32.mrb[0].mxu0
  %v800 = vadd.f32 0.0, %v799
  %v801 = vpop.f32.mrb[0].mxu0
  %v802 = vpop.f32.mrb[0].mxu0
  %v803 = vpop.f32.mrb[0].mxu0
  %804 = vdwg.mxu0
  %v806 = vrot.slane %v800, 4
  %v808 = vadd.f32 %v144, %v806
  %v809 = vtanh.pop %v808
  %810 = vst.msk [vmem:[#allocation2 + $0x28] sm:$0xf0] %vm279, %v809
  %vm811 = vcmp.eq.s32.totalorder %v155, 12
  %v813 = vrot.slane %v809, 4
  %v815 = vsel %vm811, %v813, %v760
  %v816 = vld [vmem:[#allocation2] sm:$0xff]
  %v817 = vld [vmem:[#allocation2 + $0x8] sm:$0xff]
  %v818 = vld [vmem:[#allocation2 + $0x10] sm:$0xff]
  %v819 = vld [vmem:[#allocation2 + $0x18] sm:$0xff]
  %v820 = vld [vmem:[#allocation2 + $0x20] sm:$0xff]
  %v821 = vld [vmem:[#allocation2 + $0x28] sm:$0xff]
  %v822 = vpack.c.bf16 %v817, %v816
  %v823 = vpack.c.bf16 %v819, %v818
  %v824 = vpack.c.bf16 %v821, %v820
  %v825 = vld [vmem:[%s5 + $0x20] sm:$0xf]
  %v826 = vld [vmem:[%s5 + $0x24] sm:$0xf]
  %v827 = vld [vmem:[%s5 + $0x28] sm:$0xf]
  %v828 = vld [vmem:[%s5 + $0x2c] sm:$0xf]
  %v829 = vld [vmem:[%s5 + $0x30] sm:$0xf]
  %v830 = vld [vmem:[%s5 + $0x34] sm:$0xf]
  %v831 = vld [vmem:[%s5 + $0x38] sm:$0xf]
  %v832 = vld [vmem:[%s5 + $0x3c] sm:$0xf]
  %834 = vrot.lane.b32.xlu0 %v815, 96
  %v835 = vpop.permute.xlu0 %834
  %837 = vrot.lane.b32.xlu0 %v815, 32
  %v838 = vpop.permute.xlu0 %837
  %vm840 = vcmask 261120
  %v841 = vsel %vm840, %v835, %v838
  %v842 = vpack.c.bf16 %v841, %v841
  %v843 = vld [vmem:[%s5 + $0x40] sm:$0xf]
  %v844 = vld [vmem:[%s5 + $0x44] sm:$0xf]
  %v845 = vld [vmem:[%s5 + $0x48] sm:$0xf]
  %v846 = vld [vmem:[%s5 + $0x4c] sm:$0xf]
  %v847 = vld [vmem:[%s5 + $0x50] sm:$0xf]
  %v848 = vld [vmem:[%s5 + $0x54] sm:$0xf]
  %v849 = vld [vmem:[%s5 + $0x58] sm:$0xf]
  %v850 = vld [vmem:[%s5 + $0x5c] sm:$0xf]
  %v859 = vunpack.c.l.b16 %v843
  %v860 = vunpack.c.l.b16 %v844
  %v861 = vunpack.c.l.b16 %v845
  %v862 = vunpack.c.l.b16 %v846
  %v863 = vunpack.c.l.b16 %v847
  %v864 = vunpack.c.l.b16 %v848
  %v865 = vunpack.c.l.b16 %v849
  %v866 = vunpack.c.l.b16 %v850
  %v867 = vpack.c.b16 %v860, %v859
  %v868 = vpack.c.b16 %v862, %v861
  %v869 = vpack.c.b16 %v864, %v863
  %v870 = vpack.c.b16 %v866, %v865
  %v876 = vsel %vm180, %v842, 0
  %878 = vmatprep.subr.bf16.mxu0 0
  %879 = vmatpush1.bf16.msra.mxu0 %v867
  %880 = vmatprep.subr.bf16.mxu0 0
  %881 = vmatpush1.bf16.msra.mxu0 %v868
  %882 = vmatprep.subr.bf16.mxu0 0
  %883 = vmatpush1.bf16.msra.mxu0 %v869
  %884 = vmatprep.subr.bf16.mxu0 0
  %885 = vmatpush1.bf16.msra.mxu0 %v870
  %886 = vmatprep.subr.bf16.mxu0 0
  %887 = vmatpush1.bf16.msra.mxu0 0
  %888 = vmatprep.subr.bf16.mxu0 0
  %889 = vmatpush1.bf16.msra.mxu0 0
  %890 = vmatprep.subr.bf16.mxu0 0
  %891 = vmatpush1.bf16.msra.mxu0 0
  %892 = vmatprep.subr.bf16.mxu0 0
  %893 = vmatpush1.bf16.msra.mxu0 0
  %894 = vmatprep.subr.bf16.mxu0 0
  %895 = vmatpush1.bf16.msra.mxu0 0
  %896 = vmatprep.subr.bf16.mxu0 0
  %897 = vmatpush1.bf16.msra.mxu0 0
  %898 = vmatprep.subr.bf16.mxu0 0
  %899 = vmatpush1.bf16.msra.mxu0 0
  %900 = vmatprep.subr.bf16.mxu0 0
  %901 = vmatpush1.bf16.msra.mxu0 0
  %902 = vmatprep.subr.bf16.mxu0 0
  %903 = vmatpush1.bf16.msra.mxu0 0
  %904 = vmatprep.subr.bf16.mxu0 0
  %905 = vmatpush1.bf16.msra.mxu0 0
  %906 = vmatprep.subr.bf16.mxu0 0
  %907 = vmatpush1.bf16.msra.mxu0 0
  %908 = vmatprep.subr.bf16.mxu0 0
  %909 = vmatpush1.bf16.msra.mxu0 0
  %910 = vmatprep.mubr.bf16.mxu0 0
  %911 = vmatmul.mubr.bf16.gmra.mrb[0].mxu0 %v876
  %v912 = vpop.f32.mrb[0].mxu0
  %v913 = vadd.f32 0.0, %v912
  %v914 = vpop.f32.mrb[0].mxu0
  %v915 = vpop.f32.mrb[0].mxu0
  %v916 = vpop.f32.mrb[0].mxu0
  %917 = vdwg.mxu0
  %v919 = vrot.slane %v913, 4
  %vm921 = vcmask 1043456
  %v922 = vsel %vm921, %v913, %v919
  %v923 = vld [vmem:[%s7 + $0x1] sm:$0x1]
  %v932 = vunpack.c.l.b16 %v825
  %v933 = vunpack.c.l.b16 %v826
  %v934 = vunpack.c.l.b16 %v827
  %v935 = vunpack.c.l.b16 %v828
  %v936 = vunpack.c.l.b16 %v829
  %v937 = vunpack.c.l.b16 %v830
  %v938 = vunpack.c.l.b16 %v831
  %v939 = vunpack.c.l.b16 %v832
  %v940 = vpack.c.b16 %v933, %v932
  %v941 = vpack.c.b16 %v935, %v934
  %v942 = vpack.c.b16 %v937, %v936
  %v943 = vpack.c.b16 %v939, %v938
  %v949 = vsel %vm180, %v822, 0
  %v952 = vsel %vm180, %v823, 0
  %v955 = vsel %vm180, %v824, 0
  %957 = vmatprep.subr.bf16.mxu0 0
  %958 = vmatpush1.bf16.msra.mxu0 %v940
  %959 = vmatprep.subr.bf16.mxu0 0
  %960 = vmatpush1.bf16.msra.mxu0 %v941
  %961 = vmatprep.subr.bf16.mxu0 0
  %962 = vmatpush1.bf16.msra.mxu0 %v942
  %963 = vmatprep.subr.bf16.mxu0 0
  %964 = vmatpush1.bf16.msra.mxu0 %v943
  %965 = vmatprep.subr.bf16.mxu0 0
  %966 = vmatpush1.bf16.msra.mxu0 0
  %967 = vmatprep.subr.bf16.mxu0 0
  %968 = vmatpush1.bf16.msra.mxu0 0
  %969 = vmatprep.subr.bf16.mxu0 0
  %970 = vmatpush1.bf16.msra.mxu0 0
  %971 = vmatprep.subr.bf16.mxu0 0
  %972 = vmatpush1.bf16.msra.mxu0 0
  %973 = vmatprep.subr.bf16.mxu0 0
  %974 = vmatpush1.bf16.msra.mxu0 0
  %975 = vmatprep.subr.bf16.mxu0 0
  %976 = vmatpush1.bf16.msra.mxu0 0
  %977 = vmatprep.subr.bf16.mxu0 0
  %978 = vmatpush1.bf16.msra.mxu0 0
  %979 = vmatprep.subr.bf16.mxu0 0
  %980 = vmatpush1.bf16.msra.mxu0 0
  %981 = vmatprep.subr.bf16.mxu0 0
  %982 = vmatpush1.bf16.msra.mxu0 0
  %983 = vmatprep.subr.bf16.mxu0 0
  %984 = vmatpush1.bf16.msra.mxu0 0
  %985 = vmatprep.subr.bf16.mxu0 0
  %986 = vmatpush1.bf16.msra.mxu0 0
  %987 = vmatprep.subr.bf16.mxu0 0
  %988 = vmatpush1.bf16.msra.mxu0 0
  %989 = vmatprep.mubr.bf16.mxu0 0
  %990 = vmatmul.mubr.bf16.gmra.mrb[0].mxu0 %v949
  %v991 = vpop.f32.mrb[0].mxu0
  %v992 = vadd.f32 %v922, %v991
  %v993 = vpop.f32.mrb[0].mxu0
  %v994 = vpop.f32.mrb[0].mxu0
  %v995 = vadd.f32 %v922, %v994
  %v996 = vpop.f32.mrb[0].mxu0
  %997 = vmatprep.mubr.bf16.mxu0 0
  %998 = vmatmul.mubr.bf16.gmra.mrb[0].mxu0 %v952
  %v999 = vpop.f32.mrb[0].mxu0
  %v1000 = vadd.f32 %v922, %v999
  %v1001 = vpop.f32.mrb[0].mxu0
  %v1002 = vpop.f32.mrb[0].mxu0
  %v1003 = vadd.f32 %v922, %v1002
  %v1004 = vpop.f32.mrb[0].mxu0
  %1005 = vmatprep.mubr.bf16.mxu0 0
  %1006 = vmatmul.mubr.bf16.gmra.mrb[0].mxu0 %v955
  %v1007 = vpop.f32.mrb[0].mxu0
  %v1008 = vadd.f32 %v922, %v1007
  %v1009 = vpop.f32.mrb[0].mxu0
  %v1010 = vpop.f32.mrb[0].mxu0
  %v1011 = vadd.f32 %v922, %v1010
  %v1012 = vpop.f32.mrb[0].mxu0
  %1013 = vdwg.mxu0
  %v1014 = vtanh.pop %v992
  %v1015 = vtanh.pop %v995
  %v1016 = vtanh.pop %v1000
  %v1017 = vtanh.pop %v1003
  %v1018 = vtanh.pop %v1008
  %v1019 = vtanh.pop %v1011
  %v1020 = vlaneseq
  %v1021 = vshrl.u32 %v1020, 7
  %v1022 = vsub.s32 0, %v1021
  %v1023 = vrot.slane %v923, %v1022
  %v1024 = vmul.f32 %v1014, %v1023
  %v1025 = vmul.f32 %v1015, %v1023
  %v1026 = vmul.f32 %v1016, %v1023
  %v1027 = vmul.f32 %v1017, %v1023
  %v1028 = vmul.f32 %v1018, %v1023
  %v1029 = vmul.f32 %v1019, %v1023
  %v1030 = vsel %vm840, %v1024, 0.0
  %1031 = vadd.xlane.f32.xlu0 %v1030
  %v1032 = vpop.xlane.xlu0 %1031
  %v1033 = vsel %vm840, %v1025, 0.0
  %1034 = vadd.xlane.f32.xlu0 %v1033
  %v1035 = vpop.xlane.xlu0 %1034
  %v1036 = vsel %vm840, %v1026, 0.0
  %1037 = vadd.xlane.f32.xlu0 %v1036
  %v1038 = vpop.xlane.xlu0 %1037
  %v1039 = vsel %vm840, %v1027, 0.0
  %1040 = vadd.xlane.f32.xlu0 %v1039
  %v1041 = vpop.xlane.xlu0 %1040
  %v1042 = vsel %vm840, %v1028, 0.0
  %1043 = vadd.xlane.f32.xlu0 %v1042
  %v1044 = vpop.xlane.xlu0 %1043
  %v1045 = vsel %vm840, %v1029, 0.0
  %1046 = vadd.xlane.f32.xlu0 %v1045
  %v1047 = vpop.xlane.xlu0 %1046
  %1054 = vrot.lane.b32.xlu0 %v1024, 96
  %v1055 = vpop.permute.xlu0 %1054
  %1056 = vrot.lane.b32.xlu0 %v1025, 96
  %v1057 = vpop.permute.xlu0 %1056
  %1058 = vrot.lane.b32.xlu0 %v1026, 96
  %v1059 = vpop.permute.xlu0 %1058
  %1060 = vrot.lane.b32.xlu0 %v1027, 96
  %v1061 = vpop.permute.xlu0 %1060
  %1062 = vrot.lane.b32.xlu0 %v1028, 96
  %v1063 = vpop.permute.xlu0 %1062
  %1064 = vrot.lane.b32.xlu0 %v1029, 96
  %v1065 = vpop.permute.xlu0 %1064
  %v1072 = vsel %vm840, %v1055, 0.0
  %1073 = vadd.xlane.f32.xlu0 %v1072
  %v1074 = vpop.xlane.xlu0 %1073
  %v1075 = vsel %vm840, %v1057, 0.0
  %1076 = vadd.xlane.f32.xlu0 %v1075
  %v1077 = vpop.xlane.xlu0 %1076
  %v1078 = vsel %vm840, %v1059, 0.0
  %1079 = vadd.xlane.f32.xlu0 %v1078
  %v1080 = vpop.xlane.xlu0 %1079
  %v1081 = vsel %vm840, %v1061, 0.0
  %1082 = vadd.xlane.f32.xlu0 %v1081
  %v1083 = vpop.xlane.xlu0 %1082
  %v1084 = vsel %vm840, %v1063, 0.0
  %1085 = vadd.xlane.f32.xlu0 %v1084
  %v1086 = vpop.xlane.xlu0 %1085
  %v1087 = vsel %vm840, %v1065, 0.0
  %1088 = vadd.xlane.f32.xlu0 %v1087
  %v1089 = vpop.xlane.xlu0 %1088
  %vm1090 = vcmask 7168
  %v1091 = vsel %vm1090, %v1032, %v1074
  %v1092 = vsel %vm1090, %v1035, %v1077
  %v1093 = vsel %vm1090, %v1038, %v1080
  %v1094 = vsel %vm1090, %v1041, %v1083
  %v1095 = vsel %vm1090, %v1044, %v1086
  %v1096 = vsel %vm1090, %v1047, %v1089
  %v1097 = vld [vmem:[%s1] sm:$0xff]
  %v1098 = vld [vmem:[%s1 + $0x8] sm:$0xff]
  %v1099 = vld [vmem:[%s1 + $0x10] sm:$0xff]
  %v1100 = vld [vmem:[%s1 + $0x18] sm:$0xff]
  %v1101 = vld [vmem:[%s1 + $0x20] sm:$0xff]
  %v1102 = vld [vmem:[%s1 + $0x28] sm:$0xff]
  %vm1103 = vcmp.gt.f32.partialorder %v1097, 0.0
  %vm1104 = vcmp.gt.f32.partialorder %v1098, 0.0
  %vm1105 = vcmp.gt.f32.partialorder %v1099, 0.0
  %vm1106 = vcmp.gt.f32.partialorder %v1100, 0.0
  %vm1107 = vcmp.gt.f32.partialorder %v1101, 0.0
  %vm1108 = vcmp.gt.f32.partialorder %v1102, 0.0
  %v1109 = vsel %vm1103, %v1091, -1e+30
  %v1110 = vsel %vm1104, %v1092, -1e+30
  %v1111 = vsel %vm1105, %v1093, -1e+30
  %v1112 = vsel %vm1106, %v1094, -1e+30
  %v1113 = vsel %vm1107, %v1095, -1e+30
  %v1114 = vsel %vm1108, %v1096, -1e+30
  %v1115 = vmax.f32 %v1109, -1e+30
  %v1117 = vrot.slane %v1109, 4
  %v1119 = vmax.f32 %v1115, %v1117
  %v1120 = vmax.f32 %v1119, %v1110
  %v1122 = vrot.slane %v1110, 4
  %v1124 = vmax.f32 %v1120, %v1122
  %v1125 = vmax.f32 %v1124, %v1111
  %v1127 = vrot.slane %v1111, 4
  %v1129 = vmax.f32 %v1125, %v1127
  %v1130 = vmax.f32 %v1129, %v1112
  %v1132 = vrot.slane %v1112, 4
  %v1134 = vmax.f32 %v1130, %v1132
  %v1135 = vmax.f32 %v1134, %v1113
  %v1137 = vrot.slane %v1113, 4
  %v1139 = vmax.f32 %v1135, %v1137
  %v1140 = vmax.f32 %v1139, %v1114
  %v1142 = vrot.slane %v1114, 4
  %v1144 = vmax.f32 %v1140, %v1142
  %v1145 = vlaneseq
  %v1146 = vand.u32 %v1145, 127
  %v1147 = vsub.f32 %v1109, %v1144
  %v1148 = vmul.f32 %v1147, 1.442695
  %v1149 = vpow.pop %v1148
  %v1150 = vadd.f32 %v1149, 0.0
  %vm1151 = vcmp.lt.s32.totalorder %v1146, 32
  %1153 = vset.pattern.permute.xlu0 0
  %1154 = vperm.xlu0 %1153, %v1149
  %v1155 = vpop.permute.xlu0 %1154
  %1157 = vset.pattern.permute.xlu0 1
  %1158 = vperm.xlu0 %1157, %v1149
  %v1159 = vpop.permute.xlu0 %1158
  %v1161 = vsel %vm1151, %v1155, %v1159
  %v1162 = vmul.f32 %v1161, %v816
  %v1163 = vadd.f32 %v1162, 0.0
  %v1165 = vrot.slane %v1144, 4
  %v1167 = vsub.f32 %v1109, %v1165
  %v1168 = vmul.f32 %v1167, 1.442695
  %v1169 = vpow.pop %v1168
  %v1171 = vrot.slane %v1169, 4
  %v1173 = vadd.f32 %v1150, %v1171
  %1174 = vset.pattern.permute.xlu0 0
  %1175 = vperm.xlu0 %1174, %v1169
  %v1176 = vpop.permute.xlu0 %1175
  %1178 = vset.pattern.permute.xlu0 1
  %1179 = vperm.xlu0 %1178, %v1169
  %v1180 = vpop.permute.xlu0 %1179
  %v1182 = vsel %vm1151, %v1176, %v1180
  %v1183 = vmul.f32 %v1182, %v816
  %v1185 = vrot.slane %v1183, 4
  %v1187 = vadd.f32 %v1163, %v1185
  %v1188 = vsub.f32 %v1110, %v1144
  %v1189 = vmul.f32 %v1188, 1.442695
  %v1190 = vpow.pop %v1189
  %v1191 = vadd.f32 %v1173, %v1190
  %1193 = vset.pattern.permute.xlu0 0
  %1194 = vperm.xlu0 %1193, %v1190
  %v1195 = vpop.permute.xlu0 %1194
  %1197 = vset.pattern.permute.xlu0 1
  %1198 = vperm.xlu0 %1197, %v1190
  %v1199 = vpop.permute.xlu0 %1198
  %v1201 = vsel %vm1151, %v1195, %v1199
  %v1202 = vmul.f32 %v1201, %v817
  %v1203 = vadd.f32 %v1187, %v1202
  %v1204 = vsub.f32 %v1110, %v1165
  %v1205 = vmul.f32 %v1204, 1.442695
  %v1206 = vpow.pop %v1205
  %v1208 = vrot.slane %v1206, 4
  %v1210 = vadd.f32 %v1191, %v1208
  %1211 = vset.pattern.permute.xlu0 0
  %1212 = vperm.xlu0 %1211, %v1206
  %v1213 = vpop.permute.xlu0 %1212
  %1215 = vset.pattern.permute.xlu0 1
  %1216 = vperm.xlu0 %1215, %v1206
  %v1217 = vpop.permute.xlu0 %1216
  %v1219 = vsel %vm1151, %v1213, %v1217
  %v1220 = vmul.f32 %v1219, %v817
  %v1222 = vrot.slane %v1220, 4
  %v1224 = vadd.f32 %v1203, %v1222
  %v1225 = vsub.f32 %v1111, %v1144
  %v1226 = vmul.f32 %v1225, 1.442695
  %v1227 = vpow.pop %v1226
  %v1228 = vadd.f32 %v1210, %v1227
  %1230 = vset.pattern.permute.xlu0 0
  %1231 = vperm.xlu0 %1230, %v1227
  %v1232 = vpop.permute.xlu0 %1231
  %1234 = vset.pattern.permute.xlu0 1
  %1235 = vperm.xlu0 %1234, %v1227
  %v1236 = vpop.permute.xlu0 %1235
  %v1238 = vsel %vm1151, %v1232, %v1236
  %v1239 = vmul.f32 %v1238, %v818
  %v1240 = vadd.f32 %v1224, %v1239
  %v1241 = vsub.f32 %v1111, %v1165
  %v1242 = vmul.f32 %v1241, 1.442695
  %v1243 = vpow.pop %v1242
  %v1245 = vrot.slane %v1243, 4
  %v1247 = vadd.f32 %v1228, %v1245
  %1248 = vset.pattern.permute.xlu0 0
  %1249 = vperm.xlu0 %1248, %v1243
  %v1250 = vpop.permute.xlu0 %1249
  %1252 = vset.pattern.permute.xlu0 1
  %1253 = vperm.xlu0 %1252, %v1243
  %v1254 = vpop.permute.xlu0 %1253
  %v1256 = vsel %vm1151, %v1250, %v1254
  %v1257 = vmul.f32 %v1256, %v818
  %v1259 = vrot.slane %v1257, 4
  %v1261 = vadd.f32 %v1240, %v1259
  %v1262 = vsub.f32 %v1112, %v1144
  %v1263 = vmul.f32 %v1262, 1.442695
  %v1264 = vpow.pop %v1263
  %v1265 = vadd.f32 %v1247, %v1264
  %1267 = vset.pattern.permute.xlu0 0
  %1268 = vperm.xlu0 %1267, %v1264
  %v1269 = vpop.permute.xlu0 %1268
  %1271 = vset.pattern.permute.xlu0 1
  %1272 = vperm.xlu0 %1271, %v1264
  %v1273 = vpop.permute.xlu0 %1272
  %v1275 = vsel %vm1151, %v1269, %v1273
  %v1276 = vmul.f32 %v1275, %v819
  %v1277 = vadd.f32 %v1261, %v1276
  %v1278 = vsub.f32 %v1112, %v1165
  %v1279 = vmul.f32 %v1278, 1.442695
  %v1280 = vpow.pop %v1279
  %v1282 = vrot.slane %v1280, 4
  %v1284 = vadd.f32 %v1265, %v1282
  %1285 = vset.pattern.permute.xlu0 0
  %1286 = vperm.xlu0 %1285, %v1280
  %v1287 = vpop.permute.xlu0 %1286
  %1289 = vset.pattern.permute.xlu0 1
  %1290 = vperm.xlu0 %1289, %v1280
  %v1291 = vpop.permute.xlu0 %1290
  %v1293 = vsel %vm1151, %v1287, %v1291
  %v1294 = vmul.f32 %v1293, %v819
  %v1296 = vrot.slane %v1294, 4
  %v1298 = vadd.f32 %v1277, %v1296
  %v1299 = vsub.f32 %v1113, %v1144
  %v1300 = vmul.f32 %v1299, 1.442695
  %v1301 = vpow.pop %v1300
  %v1302 = vadd.f32 %v1284, %v1301
  %1304 = vset.pattern.permute.xlu0 0
  %1305 = vperm.xlu0 %1304, %v1301
  %v1306 = vpop.permute.xlu0 %1305
  %1308 = vset.pattern.permute.xlu0 1
  %1309 = vperm.xlu0 %1308, %v1301
  %v1310 = vpop.permute.xlu0 %1309
  %v1312 = vsel %vm1151, %v1306, %v1310
  %v1313 = vmul.f32 %v1312, %v820
  %v1314 = vadd.f32 %v1298, %v1313
  %v1315 = vsub.f32 %v1113, %v1165
  %v1316 = vmul.f32 %v1315, 1.442695
  %v1317 = vpow.pop %v1316
  %v1319 = vrot.slane %v1317, 4
  %v1321 = vadd.f32 %v1302, %v1319
  %1322 = vset.pattern.permute.xlu0 0
  %1323 = vperm.xlu0 %1322, %v1317
  %v1324 = vpop.permute.xlu0 %1323
  %1326 = vset.pattern.permute.xlu0 1
  %1327 = vperm.xlu0 %1326, %v1317
  %v1328 = vpop.permute.xlu0 %1327
  %v1330 = vsel %vm1151, %v1324, %v1328
  %v1331 = vmul.f32 %v1330, %v820
  %v1333 = vrot.slane %v1331, 4
  %v1335 = vadd.f32 %v1314, %v1333
  %v1336 = vsub.f32 %v1114, %v1144
  %v1337 = vmul.f32 %v1336, 1.442695
  %v1338 = vpow.pop %v1337
  %v1339 = vadd.f32 %v1321, %v1338
  %1341 = vset.pattern.permute.xlu0 0
  %1342 = vperm.xlu0 %1341, %v1338
  %v1343 = vpop.permute.xlu0 %1342
  %1345 = vset.pattern.permute.xlu0 1
  %1346 = vperm.xlu0 %1345, %v1338
  %v1347 = vpop.permute.xlu0 %1346
  %v1349 = vsel %vm1151, %v1343, %v1347
  %v1350 = vmul.f32 %v1349, %v821
  %v1351 = vadd.f32 %v1335, %v1350
  %v1352 = vsub.f32 %v1114, %v1165
  %v1353 = vmul.f32 %v1352, 1.442695
  %v1354 = vpow.pop %v1353
  %v1356 = vrot.slane %v1354, 4
  %v1358 = vadd.f32 %v1339, %v1356
  %1359 = vset.pattern.permute.xlu0 0
  %1360 = vperm.xlu0 %1359, %v1354
  %v1361 = vpop.permute.xlu0 %1360
  %1363 = vset.pattern.permute.xlu0 1
  %1364 = vperm.xlu0 %1363, %v1354
  %v1365 = vpop.permute.xlu0 %1364
  %v1367 = vsel %vm1151, %v1361, %v1365
  %v1368 = vmul.f32 %v1367, %v821
  %v1370 = vrot.slane %v1368, 4
  %v1372 = vadd.f32 %v1351, %v1370
  %v1373 = vrcp.pop %v1358
  %1375 = vset.pattern.permute.xlu0 0
  %1376 = vperm.xlu0 %1375, %v1373
  %v1377 = vpop.permute.xlu0 %1376
  %1379 = vset.pattern.permute.xlu0 1
  %1380 = vperm.xlu0 %1379, %v1373
  %v1381 = vpop.permute.xlu0 %1380
  %v1383 = vsel %vm1151, %v1377, %v1381
  %v1384 = vmul.f32 %v1372, %v1383
  %v1385 = vld [vmem:[%s7 + $0x2] sm:$0x1]
  %v1386 = vlaneseq
  %v1387 = vshrl.u32 %v1386, 7
  %v1388 = vsub.s32 0, %v1387
  %v1389 = vrot.slane %v1385, %v1388
  %v1390 = vmul.f32 %v1384, %v1389
  %v1391 = vld [vmem:[%s7 + $0x3] sm:$0x1]
  %v1392 = vlaneseq
  %v1393 = vshrl.u32 %v1392, 7
  %v1394 = vsub.s32 0, %v1393
  %v1395 = vrot.slane %v1391, %v1394
  %v1396 = vadd.f32 %v1390, %v1395
  %v1397 = vld [vmem:[%s5 + $0x60] sm:$0xf]
  %v1398 = vld [vmem:[%s5 + $0x64] sm:$0xf]
  %v1399 = vld [vmem:[%s5 + $0x68] sm:$0xf]
  %v1400 = vld [vmem:[%s5 + $0x6c] sm:$0xf]
  %v1401 = vld [vmem:[%s5 + $0x70] sm:$0xf]
  %v1402 = vld [vmem:[%s5 + $0x74] sm:$0xf]
  %v1403 = vld [vmem:[%s5 + $0x78] sm:$0xf]
  %v1404 = vld [vmem:[%s5 + $0x7c] sm:$0xf]
  %v1405 = vpack.c.bf16 %v1396, %v1396
  %v1406 = vld [vmem:[%s7 + $0x4] sm:$0x1]
  %v1407 = vlaneseq
  %v1408 = vshrl.u32 %v1407, 7
  %v1409 = vsub.s32 0, %v1408
  %v1410 = vrot.slane %v1406, %v1409
  %v1419 = vunpack.c.l.b16 %v1397
  %v1420 = vunpack.c.l.b16 %v1398
  %v1421 = vunpack.c.l.b16 %v1399
  %v1422 = vunpack.c.l.b16 %v1400
  %v1423 = vunpack.c.l.b16 %v1401
  %v1424 = vunpack.c.l.b16 %v1402
  %v1425 = vunpack.c.l.b16 %v1403
  %v1426 = vunpack.c.l.b16 %v1404
  %v1427 = vpack.c.b16 %v1420, %v1419
  %v1428 = vpack.c.b16 %v1422, %v1421
  %v1429 = vpack.c.b16 %v1424, %v1423
  %v1430 = vpack.c.b16 %v1426, %v1425
  %v1436 = vsel %vm180, %v1405, 0
  %1438 = vmatprep.subr.bf16.mxu0 0
  %1439 = vmatpush1.bf16.msra.mxu0 %v1427
  %1440 = vmatprep.subr.bf16.mxu0 0
  %1441 = vmatpush1.bf16.msra.mxu0 %v1428
  %1442 = vmatprep.subr.bf16.mxu0 0
  %1443 = vmatpush1.bf16.msra.mxu0 %v1429
  %1444 = vmatprep.subr.bf16.mxu0 0
  %1445 = vmatpush1.bf16.msra.mxu0 %v1430
  %1446 = vmatprep.subr.bf16.mxu0 0
  %1447 = vmatpush1.bf16.msra.mxu0 0
  %1448 = vmatprep.subr.bf16.mxu0 0
  %1449 = vmatpush1.bf16.msra.mxu0 0
  %1450 = vmatprep.subr.bf16.mxu0 0
  %1451 = vmatpush1.bf16.msra.mxu0 0
  %1452 = vmatprep.subr.bf16.mxu0 0
  %1453 = vmatpush1.bf16.msra.mxu0 0
  %1454 = vmatprep.subr.bf16.mxu0 0
  %1455 = vmatpush1.bf16.msra.mxu0 0
  %1456 = vmatprep.subr.bf16.mxu0 0
  %1457 = vmatpush1.bf16.msra.mxu0 0
  %1458 = vmatprep.subr.bf16.mxu0 0
  %1459 = vmatpush1.bf16.msra.mxu0 0
  %1460 = vmatprep.subr.bf16.mxu0 0
  %1461 = vmatpush1.bf16.msra.mxu0 0
  %1462 = vmatprep.subr.bf16.mxu0 0
  %1463 = vmatpush1.bf16.msra.mxu0 0
  %1464 = vmatprep.subr.bf16.mxu0 0
  %1465 = vmatpush1.bf16.msra.mxu0 0
  %1466 = vmatprep.subr.bf16.mxu0 0
  %1467 = vmatpush1.bf16.msra.mxu0 0
  %1468 = vmatprep.subr.bf16.mxu0 0
  %1469 = vmatpush1.bf16.msra.mxu0 0
  %1470 = vmatprep.mubr.bf16.mxu0 0
  %1471 = vmatmul.mubr.bf16.gmra.mrb[0].mxu0 %v1436
  %v1472 = vpop.f32.mrb[0].mxu0
  %v1473 = vadd.f32 %v1410, %v1472
  %v1474 = vpop.f32.mrb[0].mxu0
  %v1475 = vpop.f32.mrb[0].mxu0
  %v1476 = vpop.f32.mrb[0].mxu0
  %1477 = vdwg.mxu0
  %1479 = vrot.lane.b32.xlu0 %v1396, 96
  %v1480 = vpop.permute.xlu0 %1479
  %v1482 = vmul.f32 %v1396, %v1480
  %v1483 = vadd.f32 %v1396, %v1480
  %1485 = vrot.lane.b32.xlu0 %v1482, 32
  %v1486 = vpop.permute.xlu0 %1485
  %1489 = vrot.lane.b32.xlu0 %v1483, 64
  %v1490 = vpop.permute.xlu0 %1489
  %v1492 = vsel %vm840, %v1473, %v1486
  %v1493 = vsel %vm180, %v1492, %v1490
  %v1494 = vpack.c.bf16 %v1493, %v1493
  %v1495 = vld [vmem:[%s6] sm:$0xf]
  %v1496 = vld [vmem:[%s6 + $0x4] sm:$0xf]
  %v1497 = vld [vmem:[%s6 + $0x8] sm:$0xf]
  %v1498 = vld [vmem:[%s6 + $0xc] sm:$0xf]
  %v1499 = vld [vmem:[%s6 + $0x10] sm:$0xf]
  %v1500 = vld [vmem:[%s6 + $0x14] sm:$0xf]
  %v1501 = vld [vmem:[%s6 + $0x18] sm:$0xf]
  %v1502 = vld [vmem:[%s6 + $0x1c] sm:$0xf]
  %v1503 = vld [vmem:[%s6 + $0x20] sm:$0xf]
  %v1504 = vld [vmem:[%s6 + $0x24] sm:$0xf]
  %v1505 = vld [vmem:[%s6 + $0x28] sm:$0xf]
  %v1506 = vld [vmem:[%s6 + $0x2c] sm:$0xf]
  %v1507 = vld [vmem:[%s7 + $0x5] sm:$0x1]
  %v1508 = vlaneseq
  %v1509 = vshrl.u32 %v1508, 7
  %v1510 = vsub.s32 0, %v1509
  %v1511 = vrot.slane %v1507, %v1510
  %v1524 = vunpack.c.l.b16 %v1495
  %v1525 = vunpack.c.l.b16 %v1496
  %v1526 = vunpack.c.l.b16 %v1497
  %v1527 = vunpack.c.l.b16 %v1498
  %v1528 = vunpack.c.l.b16 %v1499
  %v1529 = vunpack.c.l.b16 %v1500
  %v1530 = vunpack.c.l.b16 %v1501
  %v1531 = vunpack.c.l.b16 %v1502
  %v1532 = vunpack.c.l.b16 %v1503
  %v1533 = vunpack.c.l.b16 %v1504
  %v1534 = vunpack.c.l.b16 %v1505
  %v1535 = vunpack.c.l.b16 %v1506
  %v1536 = vpack.c.b16 %v1525, %v1524
  %v1537 = vpack.c.b16 %v1527, %v1526
  %v1538 = vpack.c.b16 %v1529, %v1528
  %v1539 = vpack.c.b16 %v1531, %v1530
  %v1540 = vpack.c.b16 %v1533, %v1532
  %v1541 = vpack.c.b16 %v1535, %v1534
  %vm1548 = vcmask 785408
  %v1550 = vsel %vm1548, %v1494, 0
  %1552 = vmatprep.subr.bf16.mxu0 0
  %1553 = vmatpush1.bf16.msra.mxu0 %v1536
  %1554 = vmatprep.subr.bf16.mxu0 0
  %1555 = vmatpush1.bf16.msra.mxu0 %v1537
  %1556 = vmatprep.subr.bf16.mxu0 0
  %1557 = vmatpush1.bf16.msra.mxu0 %v1538
  %1558 = vmatprep.subr.bf16.mxu0 0
  %1559 = vmatpush1.bf16.msra.mxu0 %v1539
  %1560 = vmatprep.subr.bf16.mxu0 0
  %1561 = vmatpush1.bf16.msra.mxu0 %v1540
  %1562 = vmatprep.subr.bf16.mxu0 0
  %1563 = vmatpush1.bf16.msra.mxu0 %v1541
  %1564 = vmatprep.subr.bf16.mxu0 0
  %1565 = vmatpush1.bf16.msra.mxu0 0
  %1566 = vmatprep.subr.bf16.mxu0 0
  %1567 = vmatpush1.bf16.msra.mxu0 0
  %1568 = vmatprep.subr.bf16.mxu0 0
  %1569 = vmatpush1.bf16.msra.mxu0 0
  %1570 = vmatprep.subr.bf16.mxu0 0
  %1571 = vmatpush1.bf16.msra.mxu0 0
  %1572 = vmatprep.subr.bf16.mxu0 0
  %1573 = vmatpush1.bf16.msra.mxu0 0
  %1574 = vmatprep.subr.bf16.mxu0 0
  %1575 = vmatpush1.bf16.msra.mxu0 0
  %1576 = vmatprep.subr.bf16.mxu0 0
  %1577 = vmatpush1.bf16.msra.mxu0 0
  %1578 = vmatprep.subr.bf16.mxu0 0
  %1579 = vmatpush1.bf16.msra.mxu0 0
  %1580 = vmatprep.subr.bf16.mxu0 0
  %1581 = vmatpush1.bf16.msra.mxu0 0
  %1582 = vmatprep.subr.bf16.mxu0 0
  %1583 = vmatpush1.bf16.msra.mxu0 0
  %1584 = vmatprep.mubr.bf16.mxu0 0
  %1585 = vmatmul.mubr.bf16.gmra.mrb[0].mxu0 %v1550
  %v1586 = vpop.f32.mrb[0].mxu0
  %v1587 = vadd.f32 %v1511, %v1586
  %v1588 = vpop.f32.mrb[0].mxu0
  %v1589 = vpop.f32.mrb[0].mxu0
  %v1590 = vpop.f32.mrb[0].mxu0
  %1591 = vdwg.mxu0
  %v1592 = vmax.f32 %v1587, 0.0
  %v1593 = vpack.c.bf16 %v1592, %v1592
  %v1594 = vld [vmem:[%s6 + $0x30] sm:$0xf]
  %v1595 = vld [vmem:[%s6 + $0x34] sm:$0xf]
  %v1596 = vld [vmem:[%s6 + $0x38] sm:$0xf]
  %v1597 = vld [vmem:[%s6 + $0x3c] sm:$0xf]
  %v1598 = vld [vmem:[%s6 + $0x40] sm:$0xf]
  %v1599 = vld [vmem:[%s6 + $0x44] sm:$0xf]
  %v1600 = vld [vmem:[%s6 + $0x48] sm:$0xf]
  %v1601 = vld [vmem:[%s6 + $0x4c] sm:$0xf]
  %v1602 = vld [vmem:[%s6 + $0x50] sm:$0xf]
  %v1603 = vld [vmem:[%s6 + $0x54] sm:$0xf]
  %v1604 = vld [vmem:[%s6 + $0x58] sm:$0xf]
  %v1605 = vld [vmem:[%s6 + $0x5c] sm:$0xf]
  %v1606 = vld [vmem:[%s7 + $0x6] sm:$0x1]
  %v1607 = vlaneseq
  %v1608 = vshrl.u32 %v1607, 7
  %v1609 = vsub.s32 0, %v1608
  %v1610 = vrot.slane %v1606, %v1609
  %v1623 = vunpack.c.l.b16 %v1594
  %v1624 = vunpack.c.l.b16 %v1595
  %v1625 = vunpack.c.l.b16 %v1596
  %v1626 = vunpack.c.l.b16 %v1597
  %v1627 = vunpack.c.l.b16 %v1598
  %v1628 = vunpack.c.l.b16 %v1599
  %v1629 = vunpack.c.l.b16 %v1600
  %v1630 = vunpack.c.l.b16 %v1601
  %v1631 = vunpack.c.l.b16 %v1602
  %v1632 = vunpack.c.l.b16 %v1603
  %v1633 = vunpack.c.l.b16 %v1604
  %v1634 = vunpack.c.l.b16 %v1605
  %v1635 = vpack.c.b16 %v1624, %v1623
  %v1636 = vpack.c.b16 %v1626, %v1625
  %v1637 = vpack.c.b16 %v1628, %v1627
  %v1638 = vpack.c.b16 %v1630, %v1629
  %v1639 = vpack.c.b16 %v1632, %v1631
  %v1640 = vpack.c.b16 %v1634, %v1633
  %v1648 = vsel %vm1548, %v1593, 0
  %1650 = vmatprep.subr.bf16.mxu0 0
  %1651 = vmatpush1.bf16.msra.mxu0 %v1635
  %1652 = vmatprep.subr.bf16.mxu0 0
  %1653 = vmatpush1.bf16.msra.mxu0 %v1636
  %1654 = vmatprep.subr.bf16.mxu0 0
  %1655 = vmatpush1.bf16.msra.mxu0 %v1637
  %1656 = vmatprep.subr.bf16.mxu0 0
  %1657 = vmatpush1.bf16.msra.mxu0 %v1638
  %1658 = vmatprep.subr.bf16.mxu0 0
  %1659 = vmatpush1.bf16.msra.mxu0 %v1639
  %1660 = vmatprep.subr.bf16.mxu0 0
  %1661 = vmatpush1.bf16.msra.mxu0 %v1640
  %1662 = vmatprep.subr.bf16.mxu0 0
  %1663 = vmatpush1.bf16.msra.mxu0 0
  %1664 = vmatprep.subr.bf16.mxu0 0
  %1665 = vmatpush1.bf16.msra.mxu0 0
  %1666 = vmatprep.subr.bf16.mxu0 0
  %1667 = vmatpush1.bf16.msra.mxu0 0
  %1668 = vmatprep.subr.bf16.mxu0 0
  %1669 = vmatpush1.bf16.msra.mxu0 0
  %1670 = vmatprep.subr.bf16.mxu0 0
  %1671 = vmatpush1.bf16.msra.mxu0 0
  %1672 = vmatprep.subr.bf16.mxu0 0
  %1673 = vmatpush1.bf16.msra.mxu0 0
  %1674 = vmatprep.subr.bf16.mxu0 0
  %1675 = vmatpush1.bf16.msra.mxu0 0
  %1676 = vmatprep.subr.bf16.mxu0 0
  %1677 = vmatpush1.bf16.msra.mxu0 0
  %1678 = vmatprep.subr.bf16.mxu0 0
  %1679 = vmatpush1.bf16.msra.mxu0 0
  %1680 = vmatprep.subr.bf16.mxu0 0
  %1681 = vmatpush1.bf16.msra.mxu0 0
  %1682 = vmatprep.mubr.bf16.mxu0 0
  %1683 = vmatmul.mubr.bf16.gmra.mrb[0].mxu0 %v1648
  %v1684 = vpop.f32.mrb[0].mxu0
  %v1685 = vadd.f32 %v1610, %v1684
  %v1686 = vpop.f32.mrb[0].mxu0
  %v1687 = vpop.f32.mrb[0].mxu0
  %v1688 = vpop.f32.mrb[0].mxu0
  %1689 = vdwg.mxu0
  %v1690 = vmax.f32 %v1685, 0.0
  %v1691 = vpack.c.bf16 %v1690, %v1690
  %v1692 = vld [vmem:[%s6 + $0x60] sm:$0xf]
  %v1693 = vld [vmem:[%s6 + $0x64] sm:$0xf]
  %v1694 = vld [vmem:[%s6 + $0x68] sm:$0xf]
  %v1695 = vld [vmem:[%s6 + $0x6c] sm:$0xf]
  %v1696 = vld [vmem:[%s6 + $0x70] sm:$0xf]
  %v1697 = vld [vmem:[%s6 + $0x74] sm:$0xf]
  %v1698 = vld [vmem:[%s6 + $0x78] sm:$0xf]
  %v1699 = vld [vmem:[%s6 + $0x7c] sm:$0xf]
  %v1700 = vld [vmem:[%s6 + $0x80] sm:$0xf]
  %v1701 = vld [vmem:[%s6 + $0x84] sm:$0xf]
  %v1702 = vld [vmem:[%s6 + $0x88] sm:$0xf]
  %v1703 = vld [vmem:[%s6 + $0x8c] sm:$0xf]
  %v1704 = vld [vmem:[%s7 + $0x7] sm:$0x1]
  %v1705 = vlaneseq
  %v1706 = vshrl.u32 %v1705, 7
  %v1707 = vsub.s32 0, %v1706
  %v1708 = vrot.slane %v1704, %v1707
  %v1721 = vunpack.c.l.b16 %v1692
  %v1722 = vunpack.c.l.b16 %v1693
  %v1723 = vunpack.c.l.b16 %v1694
  %v1724 = vunpack.c.l.b16 %v1695
  %v1725 = vunpack.c.l.b16 %v1696
  %v1726 = vunpack.c.l.b16 %v1697
  %v1727 = vunpack.c.l.b16 %v1698
  %v1728 = vunpack.c.l.b16 %v1699
  %v1729 = vunpack.c.l.b16 %v1700
  %v1730 = vunpack.c.l.b16 %v1701
  %v1731 = vunpack.c.l.b16 %v1702
  %v1732 = vunpack.c.l.b16 %v1703
  %v1733 = vpack.c.b16 %v1722, %v1721
  %v1734 = vpack.c.b16 %v1724, %v1723
  %v1735 = vpack.c.b16 %v1726, %v1725
  %v1736 = vpack.c.b16 %v1728, %v1727
  %v1737 = vpack.c.b16 %v1730, %v1729
  %v1738 = vpack.c.b16 %v1732, %v1731
  %v1746 = vsel %vm1548, %v1691, 0
  %1748 = vmatprep.subr.bf16.mxu0 0
  %1749 = vmatpush1.bf16.msra.mxu0 %v1733
  %1750 = vmatprep.subr.bf16.mxu0 0
  %1751 = vmatpush1.bf16.msra.mxu0 %v1734
  %1752 = vmatprep.subr.bf16.mxu0 0
  %1753 = vmatpush1.bf16.msra.mxu0 %v1735
  %1754 = vmatprep.subr.bf16.mxu0 0
  %1755 = vmatpush1.bf16.msra.mxu0 %v1736
  %1756 = vmatprep.subr.bf16.mxu0 0
  %1757 = vmatpush1.bf16.msra.mxu0 %v1737
  %1758 = vmatprep.subr.bf16.mxu0 0
  %1759 = vmatpush1.bf16.msra.mxu0 %v1738
  %1760 = vmatprep.subr.bf16.mxu0 0
  %1761 = vmatpush1.bf16.msra.mxu0 0
  %1762 = vmatprep.subr.bf16.mxu0 0
  %1763 = vmatpush1.bf16.msra.mxu0 0
  %1764 = vmatprep.subr.bf16.mxu0 0
  %1765 = vmatpush1.bf16.msra.mxu0 0
  %1766 = vmatprep.subr.bf16.mxu0 0
  %1767 = vmatpush1.bf16.msra.mxu0 0
  %1768 = vmatprep.subr.bf16.mxu0 0
  %1769 = vmatpush1.bf16.msra.mxu0 0
  %1770 = vmatprep.subr.bf16.mxu0 0
  %1771 = vmatpush1.bf16.msra.mxu0 0
  %1772 = vmatprep.subr.bf16.mxu0 0
  %1773 = vmatpush1.bf16.msra.mxu0 0
  %1774 = vmatprep.subr.bf16.mxu0 0
  %1775 = vmatpush1.bf16.msra.mxu0 0
  %1776 = vmatprep.subr.bf16.mxu0 0
  %1777 = vmatpush1.bf16.msra.mxu0 0
  %1778 = vmatprep.subr.bf16.mxu0 0
  %1779 = vmatpush1.bf16.msra.mxu0 0
  %1780 = vmatprep.mubr.bf16.mxu0 0
  %1781 = vmatmul.mubr.bf16.gmra.mrb[0].mxu0 %v1746
  %v1782 = vpop.f32.mrb[0].mxu0
  %v1783 = vadd.f32 %v1708, %v1782
  %v1784 = vpop.f32.mrb[0].mxu0
  %v1785 = vpop.f32.mrb[0].mxu0
  %v1786 = vpop.f32.mrb[0].mxu0
  %1787 = vdwg.mxu0
  %v1788 = vxor.u32 %v1783, 2147483648
  %v1789 = vmul.f32 %v1788, 1.442695
  %v1790 = vpow.pop %v1789
  %v1791 = vadd.f32 %v1790, 1.0
  %v1792 = vrcp.pop %v1791
  %v1793 = vmul.f32 1.0, %v1792
  %v1794 = vld [vmem:[%s3] sm:$0xf]
  %v1795 = vmul.f32 %v1793, 0.5
  %1797 = vrot.lane.b32.xlu0 %v1795, 127
  %v1798 = vpop.permute.xlu0 %1797
  %v1800 = vsub.f32 %v1793, %v1798
  %v1801 = vmax.f32 %v1800, 0.0
  %v1802 = vmul.f32 %v1801, %v1794
  %v1803 = vadd.f32 %v1793, %v1798
  %v1804 = vmin.f32 %v1803, 0.999
  %v1805 = vmul.f32 %v1804, %v1794
  %vm1806 = vcmp.eq.s32.totalorder %v1146, 2
  %vm1807 = vcmp.eq.s32.totalorder %v1146, 3
  %1809 = vset.pattern.permute.xlu0 0
  %1810 = vperm.xlu0 %1809, %v1805
  %v1811 = vpop.permute.xlu0 %1810
  %v1813 = vsel %vm1807, %v1811, %v1793
  %1815 = vset.pattern.permute.xlu0 0
  %1816 = vperm.xlu0 %1815, %v1802
  %v1817 = vpop.permute.xlu0 %1816
  %v1819 = vsel %vm1806, %v1817, %v1813
  %1820 = vst [vmem:[%s8] sm:$0xf] %v1819
  // Predicated region
  $region34: #{sentence_localizer_forward.1} parent=0 // pred_check
    _
  $region35: #{sentence_localizer_forward.1} parent=0 // pred_check_branch
    %1822 = sbr.rel (0) target = $region37
  $region36: #{sentence_localizer_forward.1} parent=0 // pred_region
    _
  $region37: #{sentence_localizer_forward.1} parent=0 // pred_fallthru
    _
  // Predicated region
  $region38: #{sentence_localizer_forward.1} parent=0 // pred_check
    _
  $region39: #{sentence_localizer_forward.1} parent=0 // pred_check_branch
    %1824 = sbr.rel (0) target = $region41
  $region40: #{sentence_localizer_forward.1} parent=0 // pred_region
    _
  $region41: #{sentence_localizer_forward.1} parent=0 // pred_fallthru
    _

</llo_original>
